<compile_context>
chip_gen: v7x
topology: tpu7x:2x2x1
jax: 0.10.0
libtpu: 0.0.40
codegen_flags: <defaults>
</compile_context>

<pallas_src>
import math
from functools import partial

import jax
import jax.numpy as jnp
from jax.experimental import pallas as pl
from jax.experimental.pallas import tpu as pltpu


# ----------------------------------------------------------------------------
# Helpers
# ----------------------------------------------------------------------------
def _full_spec(shape):
    """BlockSpec covering the whole array at a single grid point."""
    nd = len(shape)
    return pl.BlockSpec(shape, lambda i, _nd=nd: (0,) * _nd)


def _layer_norm(x, g, b, eps=1e-5):
    mu = jnp.mean(x, axis=-1, keepdims=True)
    var = jnp.mean(jnp.square(x - mu), axis=-1, keepdims=True)
    return (x - mu) * jax.lax.rsqrt(var + eps) * g + b


def positional_encoding(T, d_model):
    pos = jnp.arange(T, dtype=jnp.float32)[:, None]
    div = jnp.exp(jnp.arange(0, d_model, 2, dtype=jnp.float32)
                  * (-math.log(10000.0) / d_model))
    pe = jnp.zeros((T, d_model), jnp.float32)
    pe = pe.at[:, 0::2].set(jnp.sin(pos * div))
    pe = pe.at[:, 1::2].set(jnp.cos(pos * div))
    return pe                                    # [T, d_model]


# ----------------------------------------------------------------------------
# Kernel 1: fused conv stem  (conv1+BN1+ReLU -> conv2+BN2+ReLU -> +PE)
# ----------------------------------------------------------------------------
def _conv_stem_kernel(ae_ref, ao_ref, w1_ref, t1_ref, w2_ref, t2_ref, pe_ref,
                      o_ref, *, t_out):
    # ae/ao: [B*T, 3] im2col rows of the even / odd stride-2 output phase of
    # conv1; w1: [3, C1] (BN1 scale folded); w2: [3, C1, C] (BN2 scale folded).
    ae = ae_ref[...]
    ao = ao_ref[...]
    w1 = w1_ref[...]
    # conv1 + BN1 + ReLU for both output phases
    ye = jnp.maximum(jnp.dot(ae, w1, preferred_element_type=jnp.float32)
                     + t1_ref[...], 0.0)                      # y1 at even times
    yo = jnp.maximum(jnp.dot(ao, w1, preferred_element_type=jnp.float32)
                     + t1_ref[...], 0.0)                      # y1 at odd times
    # conv2 (stride 2, pad 1):  out[t] = y1p[2t]@W2_0 + y1p[2t+1]@W2_1 + y1p[2t+2]@W2_2
    z0 = jnp.dot(yo, w2_ref[0], preferred_element_type=jnp.float32)
    z1 = jnp.dot(ye, w2_ref[1], preferred_element_type=jnp.float32)
    z2 = jnp.dot(yo, w2_ref[2], preferred_element_type=jnp.float32)
    # y1p[2t] = yo[t-1] (zero pad row at t == 0, per batch element)
    z0 = jnp.concatenate([jnp.zeros_like(z0[:1]), z0[:-1]], axis=0)
    row = jax.lax.broadcasted_iota(jnp.int32, z0.shape, 0)
    z0 = jnp.where(row % t_out == 0, 0.0, z0)
    y = jnp.maximum(z0 + z1 + z2 + t2_ref[...], 0.0)          # BN2 shift + ReLU
    o_ref[...] = y + pe_ref[...]                              # fused PE add


# ----------------------------------------------------------------------------
# Kernel 2: fused transformer encoder stack + linear decoder
#   grid = (batch [parallel], layer [arbitrary, carried in VMEM scratch])
# ----------------------------------------------------------------------------
def _encoder_decoder_kernel(x_ref, wqkv_ref, bqkv_ref, wo_ref, bo_ref,
                            ln1g_ref, ln1b_ref, w1_ref, b1_ref, w2_ref, b2_ref,
                            ln2g_ref, ln2b_ref, wd_ref, bd_ref,
                            o_ref, carry_ref, *, num_heads):
    layer = pl.program_id(1)

    @pl.when(layer == 0)
    def _():
        carry_ref[...] = x_ref[...]

    x = carry_ref[...]                                       # [T, C] f32
    T, C = x.shape
    hd = C // num_heads

    # ---- self attention (1/sqrt(hd) folded into the q part of wqkv/bqkv) ----
    xb = x.astype(jnp.bfloat16)
    qkv = jnp.dot(xb, wqkv_ref[...],
                  preferred_element_type=jnp.float32) + bqkv_ref[...]
    q = qkv[:, :C].astype(jnp.bfloat16)
    k = qkv[:, C:2 * C].astype(jnp.bfloat16)
    v = qkv[:, 2 * C:].astype(jnp.bfloat16)

    heads = []
    for h in range(num_heads):                               # static lane slices
        sl = slice(h * hd, (h + 1) * hd)
        s = jax.lax.dot_general(q[:, sl], k[:, sl],
                                (((1,), (1,)), ((), ())),
                                preferred_element_type=jnp.float32)   # [T, T]
        s = s - jnp.max(s, axis=-1, keepdims=True)
        p = jnp.exp(s)
        p = p * pl.reciprocal(jnp.sum(p, axis=-1, keepdims=True), approx=True)
        heads.append(jnp.dot(p.astype(jnp.bfloat16), v[:, sl],
                             preferred_element_type=jnp.float32))     # [T, hd]
    attn = jnp.concatenate(heads, axis=-1)                   # [T, C]
    attn = jnp.dot(attn.astype(jnp.bfloat16), wo_ref[...],
                   preferred_element_type=jnp.float32) + bo_ref[...]

    y = _layer_norm(x + attn, ln1g_ref[...], ln1b_ref[...])  # post-norm

    # ---- feed forward ----
    h1 = jnp.dot(y.astype(jnp.bfloat16), w1_ref[...],
                 preferred_element_type=jnp.float32) + b1_ref[...]
    h1 = jnp.maximum(h1, 0.0)
    h2 = jnp.dot(h1.astype(jnp.bfloat16), w2_ref[...],
                 preferred_element_type=jnp.float32) + b2_ref[...]
    y = _layer_norm(y + h2, ln2g_ref[...], ln2b_ref[...])

    carry_ref[...] = y                                       # carry to next layer

    @pl.when(layer == pl.num_programs(1) - 1)
    def _():                                                 # fused decoder
        o_ref[...] = jnp.dot(y.astype(jnp.bfloat16), wd_ref[...],
                             preferred_element_type=jnp.float32) + bd_ref[...]


# ----------------------------------------------------------------------------
# Forward pass
# ----------------------------------------------------------------------------
def sacall_forward(p, x, num_heads=4):
    """x: [batch, len]  ->  logits [T, batch, alphabet_size]."""
    B, L = x.shape
    assert L % 4 == 0, "toy implementation assumes len divisible by 4"
    T = L // 4                                  # two stride-2 convs
    C = p["w2"].shape[-1]                       # d_model
    F = p["wf1"].shape[-1]                      # d_ff
    A = p["wd"].shape[-1]                       # alphabet size
    NL = p["wqkv"].shape[0]                     # num transformer layers
    C3 = 3 * C

    # ---- tiny XLA-side prep: stride-4 phase im2col for conv1, PE table ----
    xpad = jnp.pad(x, ((0, 0), (1, 1)))

    def phase(s):
        return xpad[:, s:s + 4 * T:4]           # [B, T]

    ae = jnp.stack([phase(0), phase(1), phase(2)], axis=-1).reshape(B * T, 3)
    ao = jnp.stack([phase(2), phase(3), phase(4)], axis=-1).reshape(B * T, 3)
    pe = jnp.tile(positional_encoding(T, C), (B, 1))          # [B*T, C], b-major

    # ---- fused conv stem ----
    stem = pl.pallas_call(
        partial(_conv_stem_kernel, t_out=T),
        out_shape=jax.ShapeDtypeStruct((B * T, C), jnp.float32),
        grid=(1,),
        in_specs=[_full_spec((B * T, 3)), _full_spec((B * T, 3)),
                  _full_spec(p["w1"].shape), _full_spec(p["t1"].shape),
                  _full_spec(p["w2"].shape), _full_spec(p["t2"].shape),
                  _full_spec((B * T, C))],
        out_specs=_full_spec((B * T, C)),
        compiler_params=pltpu.CompilerParams(
            dimension_semantics=("arbitrary",)),
    )(ae, ao, p["w1"], p["t1"], p["w2"], p["t2"], pe)

    xenc = stem.reshape(B, T, C)                              # [B, T, C]

    # ---- fused transformer encoder stack + decoder ----
    w_spec = lambda shp: pl.BlockSpec((None,) + shp, lambda b, l: (l, 0, 0))
    logits = pl.pallas_call(
        partial(_encoder_decoder_kernel, num_heads=num_heads),
        out_shape=jax.ShapeDtypeStruct((B, T, A), jnp.float32),
        grid=(B, NL),
        in_specs=[
            pl.BlockSpec((None, T, C), lambda b, l: (b, 0, 0)),   # x
            w_spec((C, C3)),                                      # wqkv
            w_spec((1, C3)),                                      # bqkv
            w_spec((C, C)),                                       # wo
            w_spec((1, C)),                                       # bo
            w_spec((1, C)),                                       # ln1 gamma
            w_spec((1, C)),                                       # ln1 beta
            w_spec((C, F)),                                       # ff1 w
            w_spec((1, F)),                                       # ff1 b
            w_spec((F, C)),                                       # ff2 w
            w_spec((1, C)),                                       # ff2 b
            w_spec((1, C)),                                       # ln2 gamma
            w_spec((1, C)),                                       # ln2 beta
            pl.BlockSpec((C, A), lambda b, l: (0, 0)),            # decoder w
            pl.BlockSpec((1, A), lambda b, l: (0, 0)),            # decoder b
        ],
        out_specs=pl.BlockSpec((None, T, A), lambda b, l: (b, 0, 0)),
        scratch_shapes=[pltpu.VMEM((T, C), jnp.float32)],         # layer carry
        compiler_params=pltpu.CompilerParams(
            dimension_semantics=("parallel", "arbitrary")),
    )(xenc, p["wqkv"], p["bqkv"], p["wo"], p["bo"], p["ln1g"], p["ln1b"],
      p["wf1"], p["bf1"], p["wf2"], p["bf2"], p["ln2g"], p["ln2b"],
      p["wd"], p["bd"])

    return jnp.transpose(logits, (1, 0, 2))                   # [T, B, A]


# ----------------------------------------------------------------------------
# Parameter init (PyTorch layout) + one-time kernel-layout preparation
# ----------------------------------------------------------------------------
def init_params(key, d_model=32, d_ff=64, num_layers=2, alphabet_size=5):
    keys = iter(jax.random.split(key, 64))

    def nrm(shape, scale=0.05):
        return scale * jax.random.normal(next(keys), shape, dtype=jnp.float32)

    c_half = d_model // 2
    params = {
        "conv1_w": nrm((c_half, 1, 3)),
        "bn1_gamma": 1.0 + nrm((c_half,)),
        "bn1_beta": nrm((c_half,)),
        "bn1_mean": nrm((c_half,)),
        "bn1_var": 1.0 + 0.1 * jnp.abs(nrm((c_half,))),
        "conv2_w": nrm((d_model, c_half, 3)),
        "bn2_gamma": 1.0 + nrm((d_model,)),
        "bn2_beta": nrm((d_model,)),
        "bn2_mean": nrm((d_model,)),
        "bn2_var": 1.0 + 0.1 * jnp.abs(nrm((d_model,))),
        "dec_w": nrm((alphabet_size, d_model)),
        "dec_b": nrm((alphabet_size,)),
        "layers": [],
    }
    for _ in range(num_layers):
        params["layers"].append({
            "in_proj_w": nrm((3 * d_model, d_model)),
            "in_proj_b": nrm((3 * d_model,)),
            "out_proj_w": nrm((d_model, d_model)),
            "out_proj_b": nrm((d_model,)),
            "ln1_g": jnp.ones((d_model,), jnp.float32),
            "ln1_b": jnp.zeros((d_model,), jnp.float32),
            "ln2_g": jnp.ones((d_model,), jnp.float32),
            "ln2_b": jnp.zeros((d_model,), jnp.float32),
            "ff1_w": nrm((d_ff, d_model)),
            "ff1_b": nrm((d_ff,)),
            "ff2_w": nrm((d_model, d_ff)),
            "ff2_b": nrm((d_model,)),
        })
    return params


def prepare_params(params, num_heads):
    """One-time (outside jit) transposes / BN folds / layer stacking / bf16 cast."""
    eps = 1e-5
    d_model = params["conv2_w"].shape[0]
    scale = 1.0 / math.sqrt(d_model // num_heads)
    p = {}

    # conv1 + BN1 folded:  w1[k, c] = conv1_w[c, 0, k] * s1[c]
    s1 = params["bn1_gamma"] * jax.lax.rsqrt(params["bn1_var"] + eps)
    p["w1"] = jnp.transpose(params["conv1_w"][:, 0, :]) * s1
    p["t1"] = (params["bn1_beta"] - params["bn1_mean"] * s1)[None, :]
    # conv2 + BN2 folded:  w2[k, ci, co] = conv2_w[co, ci, k] * s2[co]
    s2 = params["bn2_gamma"] * jax.lax.rsqrt(params["bn2_var"] + eps)
    p["w2"] = jnp.transpose(params["conv2_w"], (2, 1, 0)) * s2[None, None, :]
    p["t2"] = (params["bn2_beta"] - params["bn2_mean"] * s2)[None, :]

    def stack(fn):
        return jnp.stack([fn(lp) for lp in params["layers"]], axis=0)

    # attention scale folded into the q third of the in-projection
    p["wqkv"] = stack(lambda lp: jnp.concatenate(
        [lp["in_proj_w"][:d_model] * scale, lp["in_proj_w"][d_model:]], 0).T
        ).astype(jnp.bfloat16)                                   # [L, C, 3C]
    p["bqkv"] = stack(lambda lp: jnp.concatenate(
        [lp["in_proj_b"][:d_model] * scale, lp["in_proj_b"][d_model:]])[None, :])
    p["wo"] = stack(lambda lp: lp["out_proj_w"].T).astype(jnp.bfloat16)
    p["bo"] = stack(lambda lp: lp["out_proj_b"][None, :])
    p["ln1g"] = stack(lambda lp: lp["ln1_g"][None, :])
    p["ln1b"] = stack(lambda lp: lp["ln1_b"][None, :])
    p["wf1"] = stack(lambda lp: lp["ff1_w"].T).astype(jnp.bfloat16)   # [L, C, F]
    p["bf1"] = stack(lambda lp: lp["ff1_b"][None, :])
    p["wf2"] = stack(lambda lp: lp["ff2_w"].T).astype(jnp.bfloat16)   # [L, F, C]
    p["bf2"] = stack(lambda lp: lp["ff2_b"][None, :])
    p["ln2g"] = stack(lambda lp: lp["ln2_g"][None, :])
    p["ln2b"] = stack(lambda lp: lp["ln2_b"][None, :])
    p["wd"] = params["dec_w"].T.astype(jnp.bfloat16)                  # [C, A]
    p["bd"] = params["dec_b"][None, :]
    return p


if __name__ == "__main__":
    # Small shapes consistent with the module: batch=2, signal len=64,
    # d_model=32, heads=4, d_ff=64, layers=2, alphabet=5  -> T = 64/4 = 16.
    key = jax.random.PRNGKey(0)
    pkey, xkey = jax.random.split(key)
    raw = init_params(pkey, d_model=32, d_ff=64, num_layers=2, alphabet_size=5)
    params = prepare_params(raw, num_heads=4)          # one-time, outside jit
    x = jax.random.normal(xkey, (2, 64), dtype=jnp.float32)   # [batch, len]

    fwd = jax.jit(partial(sacall_forward, num_heads=4))
    out = jax.block_until_ready(fwd(params, x))
    assert out.shape == (16, 2, 5), out.shape          # T x B x alphabet
    assert bool(jnp.all(jnp.isfinite(out)))
    print("KERNEL_OK")
</pallas_src>

<mosaic_0001>
module attributes {stable_mosaic.version = 11 : i64} {
  func.func @_conv_stem_kernel(%arg0: i32, %arg1: memref<32x3xf32, #tpu.memory_space<vmem>>, %arg2: memref<32x3xf32, #tpu.memory_space<vmem>>, %arg3: memref<3x16xf32, #tpu.memory_space<vmem>>, %arg4: memref<1x16xf32, #tpu.memory_space<vmem>>, %arg5: memref<3x16x32xf32, #tpu.memory_space<vmem>>, %arg6: memref<1x32xf32, #tpu.memory_space<vmem>>, %arg7: memref<32x32xf32, #tpu.memory_space<vmem>>, %arg8: memref<32x32xf32, #tpu.memory_space<vmem>>) attributes {dimension_semantics = [#tpu.dimension_semantics<arbitrary>], iteration_bounds = array<i64: 1>, scalar_prefetch = 0 : i64, scratch_operands = 0 : i64, tpu.core_type = #tpu.core_type<tc>, window_params = [{pipeline_mode = #tpu.pipeline_mode<synchronous>, transform_indices = @transform_0, window_bounds = array<i64: 32, 3>}, {pipeline_mode = #tpu.pipeline_mode<synchronous>, transform_indices = @transform_1, window_bounds = array<i64: 32, 3>}, {pipeline_mode = #tpu.pipeline_mode<synchronous>, transform_indices = @transform_2, window_bounds = array<i64: 3, 16>}, {pipeline_mode = #tpu.pipeline_mode<synchronous>, transform_indices = @transform_3, window_bounds = array<i64: 1, 16>}, {pipeline_mode = #tpu.pipeline_mode<synchronous>, transform_indices = @transform_4, window_bounds = array<i64: 3, 16, 32>}, {pipeline_mode = #tpu.pipeline_mode<synchronous>, transform_indices = @transform_5, window_bounds = array<i64: 1, 32>}, {pipeline_mode = #tpu.pipeline_mode<synchronous>, transform_indices = @transform_6, window_bounds = array<i64: 32, 32>}, {pipeline_mode = #tpu.pipeline_mode<synchronous>, transform_indices = @transform_7, window_bounds = array<i64: 32, 32>}]} {
    %c0 = arith.constant 0 : index
    %c0_0 = arith.constant 0 : index
    %0 = vector.load %arg1[%c0, %c0_0] : memref<32x3xf32, #tpu.memory_space<vmem>>, vector<32x3xf32>
    %c0_1 = arith.constant 0 : index
    %c0_2 = arith.constant 0 : index
    %1 = vector.load %arg2[%c0_1, %c0_2] : memref<32x3xf32, #tpu.memory_space<vmem>>, vector<32x3xf32>
    %c0_3 = arith.constant 0 : index
    %c0_4 = arith.constant 0 : index
    %2 = vector.load %arg3[%c0_3, %c0_4] : memref<3x16xf32, #tpu.memory_space<vmem>>, vector<3x16xf32>
    %cst = arith.constant dense<0.000000e+00> : vector<32x16xf32>
    %3 = tpu.matmul %0, %2, %cst {dimension_numbers = #tpu.dot_dimension_numbers<[1], [0], [0], [1], [0, 0, 1, 1], [], []>} : vector<32x3xf32>, vector<3x16xf32>, vector<32x16xf32> -> vector<32x16xf32>
    %c0_5 = arith.constant 0 : index
    %c0_6 = arith.constant 0 : index
    %4 = vector.load %arg4[%c0_5, %c0_6] : memref<1x16xf32, #tpu.memory_space<vmem>>, vector<1x16xf32>
    %5 = vector.broadcast %4 : vector<1x16xf32> to vector<32x16xf32>
    %6 = arith.addf %3, %5 : vector<32x16xf32>
    %cst_7 = arith.constant 0.000000e+00 : f32
    %7 = vector.broadcast %cst_7 : f32 to vector<32x16xf32>
    %8 = arith.maximumf %6, %7 : vector<32x16xf32>
    %cst_8 = arith.constant dense<0.000000e+00> : vector<32x16xf32>
    %9 = tpu.matmul %1, %2, %cst_8 {dimension_numbers = #tpu.dot_dimension_numbers<[1], [0], [0], [1], [0, 0, 1, 1], [], []>} : vector<32x3xf32>, vector<3x16xf32>, vector<32x16xf32> -> vector<32x16xf32>
    %c0_9 = arith.constant 0 : index
    %c0_10 = arith.constant 0 : index
    %10 = vector.load %arg4[%c0_9, %c0_10] : memref<1x16xf32, #tpu.memory_space<vmem>>, vector<1x16xf32>
    %11 = vector.broadcast %10 : vector<1x16xf32> to vector<32x16xf32>
    %12 = arith.addf %9, %11 : vector<32x16xf32>
    %cst_11 = arith.constant 0.000000e+00 : f32
    %13 = vector.broadcast %cst_11 : f32 to vector<32x16xf32>
    %14 = arith.maximumf %12, %13 : vector<32x16xf32>
    %c0_12 = arith.constant 0 : index
    %c0_13 = arith.constant 0 : index
    %c0_14 = arith.constant 0 : index
    %15 = vector.load %arg5[%c0_12, %c0_13, %c0_14] : memref<3x16x32xf32, #tpu.memory_space<vmem>>, vector<1x16x32xf32>
    %16 = vector.shape_cast %15 : vector<1x16x32xf32> to vector<16x32xf32>
    %cst_15 = arith.constant dense<0.000000e+00> : vector<32x32xf32>
    %17 = tpu.matmul %14, %16, %cst_15 {dimension_numbers = #tpu.dot_dimension_numbers<[1], [0], [0], [1], [0, 0, 1, 1], [], []>} : vector<32x16xf32>, vector<16x32xf32>, vector<32x32xf32> -> vector<32x32xf32>
    %c1 = arith.constant 1 : index
    %c0_16 = arith.constant 0 : index
    %c0_17 = arith.constant 0 : index
    %18 = vector.load %arg5[%c1, %c0_16, %c0_17] : memref<3x16x32xf32, #tpu.memory_space<vmem>>, vector<1x16x32xf32>
    %19 = vector.shape_cast %18 : vector<1x16x32xf32> to vector<16x32xf32>
    %cst_18 = arith.constant dense<0.000000e+00> : vector<32x32xf32>
    %20 = tpu.matmul %8, %19, %cst_18 {dimension_numbers = #tpu.dot_dimension_numbers<[1], [0], [0], [1], [0, 0, 1, 1], [], []>} : vector<32x16xf32>, vector<16x32xf32>, vector<32x32xf32> -> vector<32x32xf32>
    %c2 = arith.constant 2 : index
    %c0_19 = arith.constant 0 : index
    %c0_20 = arith.constant 0 : index
    %21 = vector.load %arg5[%c2, %c0_19, %c0_20] : memref<3x16x32xf32, #tpu.memory_space<vmem>>, vector<1x16x32xf32>
    %22 = vector.shape_cast %21 : vector<1x16x32xf32> to vector<16x32xf32>
    %cst_21 = arith.constant dense<0.000000e+00> : vector<32x32xf32>
    %23 = tpu.matmul %14, %22, %cst_21 {dimension_numbers = #tpu.dot_dimension_numbers<[1], [0], [0], [1], [0, 0, 1, 1], [], []>} : vector<32x16xf32>, vector<16x32xf32>, vector<32x32xf32> -> vector<32x32xf32>
    %cst_22 = arith.constant 0.000000e+00 : f32
    %24 = vector.broadcast %cst_22 : f32 to vector<1x32xf32>
    %25 = vector.extract_strided_slice %17 {offsets = [0, 0], sizes = [31, 32], strides = [1, 1]} : vector<32x32xf32> to vector<31x32xf32>
    %26 = tpu.concatenate %24, %25 in 0 : vector<1x32xf32>, vector<31x32xf32> -> vector<32x32xf32>
    %27 = tpu.iota {dimensions = array<i32: 0>} : vector<32x32xi32>
    %c16_i32 = arith.constant 16 : i32
    %c0_i32 = arith.constant 0 : i32
    %28 = arith.cmpi eq, %c16_i32, %c0_i32 : i32
    %c1_i32 = arith.constant 1 : i32
    %29 = arith.select %28, %c1_i32, %c16_i32 : i32
    %30 = vector.broadcast %29 : i32 to vector<32x32xi32>
    %31 = arith.remsi %27, %30 : vector<32x32xi32>
    %c0_i32_23 = arith.constant 0 : i32
    %32 = vector.broadcast %c0_i32_23 : i32 to vector<32x32xi32>
    %33 = arith.cmpi ne, %31, %32 : vector<32x32xi32>
    %c0_i32_24 = arith.constant 0 : i32
    %34 = vector.broadcast %c0_i32_24 : i32 to vector<32x32xi32>
    %35 = arith.cmpi slt, %31, %34 : vector<32x32xi32>
    %c0_i32_25 = arith.constant 0 : i32
    %36 = arith.cmpi slt, %29, %c0_i32_25 : i32
    %37 = vector.broadcast %36 : i1 to vector<32x32xi1>
    %38 = vector.broadcast %37 : vector<32x32xi1> to vector<32x32xi1>
    %39 = arith.xori %35, %38 : vector<32x32xi1>
    %40 = arith.andi %39, %33 : vector<32x32xi1>
    %41 = vector.broadcast %29 : i32 to vector<32x32xi32>
    %42 = arith.addi %31, %41 : vector<32x32xi32>
    %43 = arith.select %40, %42, %31 : vector<32x32xi1>, vector<32x32xi32>
    %c0_i32_26 = arith.constant 0 : i32
    %44 = vector.broadcast %c0_i32_26 : i32 to vector<32x32xi32>
    %45 = arith.cmpi eq, %43, %44 : vector<32x32xi32>
    %cst_27 = arith.constant 0.000000e+00 : f32
    %46 = vector.broadcast %cst_27 : f32 to vector<32x32xf32>
    %47 = arith.select %45, %46, %26 : vector<32x32xi1>, vector<32x32xf32>
    %48 = arith.addf %47, %20 : vector<32x32xf32>
    %49 = arith.addf %48, %23 : vector<32x32xf32>
    %c0_28 = arith.constant 0 : index
    %c0_29 = arith.constant 0 : index
    %50 = vector.load %arg6[%c0_28, %c0_29] : memref<1x32xf32, #tpu.memory_space<vmem>>, vector<1x32xf32>
    %51 = vector.broadcast %50 : vector<1x32xf32> to vector<32x32xf32>
    %52 = arith.addf %49, %51 : vector<32x32xf32>
    %cst_30 = arith.constant 0.000000e+00 : f32
    %53 = vector.broadcast %cst_30 : f32 to vector<32x32xf32>
    %54 = arith.maximumf %52, %53 : vector<32x32xf32>
    %c0_31 = arith.constant 0 : index
    %c0_32 = arith.constant 0 : index
    %55 = vector.load %arg7[%c0_31, %c0_32] : memref<32x32xf32, #tpu.memory_space<vmem>>, vector<32x32xf32>
    %56 = arith.addf %54, %55 : vector<32x32xf32>
    %c0_33 = arith.constant 0 : index
    %c0_34 = arith.constant 0 : index
    %57 = vector.load %arg8[%c0_33, %c0_34] : memref<32x32xf32, #tpu.memory_space<vmem>>, vector<32x32xf32>
    tpu.vector_store %arg8[%c0_33, %c0_34], %56 {strides = array<i32>} : memref<32x32xf32, #tpu.memory_space<vmem>>, vector<32x32xf32>,
    return
  }
  func.func @transform_0(%arg0: i32) -> (i32, i32) {
    %c0_i32 = arith.constant 0 : i32
    %c0_i32_0 = arith.constant 0 : i32
    %c0_i32_1 = arith.constant 0 : i32
    return %c0_i32, %c0_i32_0 : i32, i32
  }
  func.func @transform_1(%arg0: i32) -> (i32, i32) {
    %c0_i32 = arith.constant 0 : i32
    %c0_i32_0 = arith.constant 0 : i32
    %c0_i32_1 = arith.constant 0 : i32
    return %c0_i32, %c0_i32_0 : i32, i32
  }
  func.func @transform_2(%arg0: i32) -> (i32, i32) {
    %c0_i32 = arith.constant 0 : i32
    %c0_i32_0 = arith.constant 0 : i32
    %c0_i32_1 = arith.constant 0 : i32
    return %c0_i32, %c0_i32_0 : i32, i32
  }
  func.func @transform_3(%arg0: i32) -> (i32, i32) {
    %c0_i32 = arith.constant 0 : i32
    %c0_i32_0 = arith.constant 0 : i32
    %c0_i32_1 = arith.constant 0 : i32
    return %c0_i32, %c0_i32_0 : i32, i32
  }
  func.func @transform_4(%arg0: i32) -> (i32, i32, i32) {
    %c0_i32 = arith.constant 0 : i32
    %c0_i32_0 = arith.constant 0 : i32
    %c0_i32_1 = arith.constant 0 : i32
    %c0_i32_2 = arith.constant 0 : i32
    return %c0_i32, %c0_i32_0, %c0_i32_1 : i32, i32, i32
  }
  func.func @transform_5(%arg0: i32) -> (i32, i32) {
    %c0_i32 = arith.constant 0 : i32
    %c0_i32_0 = arith.constant 0 : i32
    %c0_i32_1 = arith.constant 0 : i32
    return %c0_i32, %c0_i32_0 : i32, i32
  }
  func.func @transform_6(%arg0: i32) -> (i32, i32) {
    %c0_i32 = arith.constant 0 : i32
    %c0_i32_0 = arith.constant 0 : i32
    %c0_i32_1 = arith.constant 0 : i32
    return %c0_i32, %c0_i32_0 : i32, i32
  }
  func.func @transform_7(%arg0: i32) -> (i32, i32) {
    %c0_i32 = arith.constant 0 : i32
    %c0_i32_0 = arith.constant 0 : i32
    %c0_i32_1 = arith.constant 0 : i32
    return %c0_i32, %c0_i32_0 : i32, i32
  }
}

module attributes {stable_mosaic.version = 11 : i64} {
  func.func @_encoder_decoder_kernel(%arg0: i32, %arg1: i32, %arg2: memref<1x16x32xf32, #tpu.memory_space<vmem>>, %arg3: memref<1x32x96xbf16, #tpu.memory_space<vmem>>, %arg4: memref<1x1x96xf32, #tpu.memory_space<vmem>>, %arg5: memref<1x32x32xbf16, #tpu.memory_space<vmem>>, %arg6: memref<1x1x32xf32, #tpu.memory_space<vmem>>, %arg7: memref<1x1x32xf32, #tpu.memory_space<vmem>>, %arg8: memref<1x1x32xf32, #tpu.memory_space<vmem>>, %arg9: memref<1x32x64xbf16, #tpu.memory_space<vmem>>, %arg10: memref<1x1x64xf32, #tpu.memory_space<vmem>>, %arg11: memref<1x64x32xbf16, #tpu.memory_space<vmem>>, %arg12: memref<1x1x32xf32, #tpu.memory_space<vmem>>, %arg13: memref<1x1x32xf32, #tpu.memory_space<vmem>>, %arg14: memref<1x1x32xf32, #tpu.memory_space<vmem>>, %arg15: memref<32x5xbf16, #tpu.memory_space<vmem>>, %arg16: memref<1x5xf32, #tpu.memory_space<vmem>>, %arg17: memref<1x16x5xf32, #tpu.memory_space<vmem>>, %arg18: memref<16x32xf32, #tpu.memory_space<vmem>>) attributes {dimension_semantics = [#tpu.dimension_semantics<parallel>, #tpu.dimension_semantics<arbitrary>], iteration_bounds = array<i64: 2, 2>, scalar_prefetch = 0 : i64, scratch_operands = 1 : i64, tpu.core_type = #tpu.core_type<tc>, window_params = [{transform_indices = @transform_0, window_bounds = array<i64: 1, 16, 32>}, {transform_indices = @transform_1, window_bounds = array<i64: 1, 32, 96>}, {transform_indices = @transform_2, window_bounds = array<i64: 1, 1, 96>}, {transform_indices = @transform_3, window_bounds = array<i64: 1, 32, 32>}, {transform_indices = @transform_4, window_bounds = array<i64: 1, 1, 32>}, {transform_indices = @transform_5, window_bounds = array<i64: 1, 1, 32>}, {transform_indices = @transform_6, window_bounds = array<i64: 1, 1, 32>}, {transform_indices = @transform_7, window_bounds = array<i64: 1, 32, 64>}, {transform_indices = @transform_8, window_bounds = array<i64: 1, 1, 64>}, {transform_indices = @transform_9, window_bounds = array<i64: 1, 64, 32>}, {transform_indices = @transform_10, window_bounds = array<i64: 1, 1, 32>}, {transform_indices = @transform_11, window_bounds = array<i64: 1, 1, 32>}, {transform_indices = @transform_12, window_bounds = array<i64: 1, 1, 32>}, {pipeline_mode = #tpu.pipeline_mode<synchronous>, transform_indices = @transform_13, window_bounds = array<i64: 32, 5>}, {pipeline_mode = #tpu.pipeline_mode<synchronous>, transform_indices = @transform_14, window_bounds = array<i64: 1, 5>}, {transform_indices = @transform_15, window_bounds = array<i64: 1, 16, 5>}]} {
    %c0_i32 = arith.constant 0 : i32
    %0 = arith.cmpi eq, %arg1, %c0_i32 : i32
    %1 = arith.extui %0 : i1 to i32
    %c0_i32_0 = arith.constant 0 : i32
    %2 = arith.cmpi ne, %1, %c0_i32_0 : i32
    scf.if %2 {
      %c0_71 = arith.constant 0 : index
      %c0_72 = arith.constant 0 : index
      %c0_73 = arith.constant 0 : index
      %167 = vector.load %arg2[%c0_71, %c0_72, %c0_73] : memref<1x16x32xf32, #tpu.memory_space<vmem>>, vector<1x16x32xf32>
      %168 = vector.shape_cast %167 : vector<1x16x32xf32> to vector<16x32xf32>
      %c0_74 = arith.constant 0 : index
      %c0_75 = arith.constant 0 : index
      %169 = vector.load %arg18[%c0_74, %c0_75] : memref<16x32xf32, #tpu.memory_space<vmem>>, vector<16x32xf32>
      tpu.vector_store %arg18[%c0_74, %c0_75], %168 {strides = array<i32>} : memref<16x32xf32, #tpu.memory_space<vmem>>, vector<16x32xf32>,
    } else {
    }
    %c0 = arith.constant 0 : index
    %c0_1 = arith.constant 0 : index
    %3 = vector.load %arg18[%c0, %c0_1] : memref<16x32xf32, #tpu.memory_space<vmem>>, vector<16x32xf32>
    %4 = arith.truncf %3 : vector<16x32xf32> to vector<16x32xbf16>
    %c0_2 = arith.constant 0 : index
    %c0_3 = arith.constant 0 : index
    %c0_4 = arith.constant 0 : index
    %5 = vector.load %arg3[%c0_2, %c0_3, %c0_4] : memref<1x32x96xbf16, #tpu.memory_space<vmem>>, vector<1x32x96xbf16>
    %6 = vector.shape_cast %5 : vector<1x32x96xbf16> to vector<32x96xbf16>
    %cst = arith.constant dense<0.000000e+00> : vector<16x96xf32>
    %7 = tpu.matmul %4, %6, %cst {dimension_numbers = #tpu.dot_dimension_numbers<[1], [0], [0], [1], [0, 0, 1, 1], [], []>} : vector<16x32xbf16>, vector<32x96xbf16>, vector<16x96xf32> -> vector<16x96xf32>
    %c0_5 = arith.constant 0 : index
    %c0_6 = arith.constant 0 : index
    %c0_7 = arith.constant 0 : index
    %8 = vector.load %arg4[%c0_5, %c0_6, %c0_7] : memref<1x1x96xf32, #tpu.memory_space<vmem>>, vector<1x1x96xf32>
    %9 = vector.shape_cast %8 : vector<1x1x96xf32> to vector<1x96xf32>
    %10 = vector.broadcast %9 : vector<1x96xf32> to vector<16x96xf32>
    %11 = arith.addf %7, %10 : vector<16x96xf32>
    %12 = vector.extract_strided_slice %11 {offsets = [0, 0], sizes = [16, 32], strides = [1, 1]} : vector<16x96xf32> to vector<16x32xf32>
    %13 = arith.truncf %12 : vector<16x32xf32> to vector<16x32xbf16>
    %14 = vector.extract_strided_slice %11 {offsets = [0, 32], sizes = [16, 32], strides = [1, 1]} : vector<16x96xf32> to vector<16x32xf32>
    %15 = arith.truncf %14 : vector<16x32xf32> to vector<16x32xbf16>
    %16 = vector.extract_strided_slice %11 {offsets = [0, 64], sizes = [16, 32], strides = [1, 1]} : vector<16x96xf32> to vector<16x32xf32>
    %17 = arith.truncf %16 : vector<16x32xf32> to vector<16x32xbf16>
    %18 = vector.extract_strided_slice %13 {offsets = [0, 0], sizes = [16, 8], strides = [1, 1]} : vector<16x32xbf16> to vector<16x8xbf16>
    %19 = vector.extract_strided_slice %15 {offsets = [0, 0], sizes = [16, 8], strides = [1, 1]} : vector<16x32xbf16> to vector<16x8xbf16>
    %cst_8 = arith.constant dense<0.000000e+00> : vector<16x16xf32>
    %20 = tpu.matmul %18, %19, %cst_8 {dimension_numbers = #tpu.dot_dimension_numbers<[1], [1], [0], [0], [0, 0, 1, 0], [], []>} : vector<16x8xbf16>, vector<16x8xbf16>, vector<16x16xf32> -> vector<16x16xf32>
    %cst_9 = arith.constant dense<0xFF800000> : vector<16xf32>
    %21 = vector.multi_reduction <maximumf>, %20, %cst_9 [1] : vector<16x16xf32> to vector<16xf32>
    %22 = vector.shape_cast %21 : vector<16xf32> to vector<16x1xf32>
    %23 = vector.broadcast %22 : vector<16x1xf32> to vector<16x16xf32>
    %24 = arith.subf %20, %23 : vector<16x16xf32>
    %25 = math.exp %24 : vector<16x16xf32>
    %cst_10 = arith.constant dense<0.000000e+00> : vector<16xf32>
    %26 = vector.multi_reduction <add>, %25, %cst_10 [1] : vector<16x16xf32> to vector<16xf32>
    %27 = vector.shape_cast %26 : vector<16xf32> to vector<16x1xf32>
    %28 = tpu.reciprocal %27 {approx = true} : vector<16x1xf32> -> vector<16x1xf32>
    %29 = vector.broadcast %28 : vector<16x1xf32> to vector<16x16xf32>
    %30 = arith.mulf %25, %29 : vector<16x16xf32>
    %31 = arith.truncf %30 : vector<16x16xf32> to vector<16x16xbf16>
    %32 = vector.extract_strided_slice %17 {offsets = [0, 0], sizes = [16, 8], strides = [1, 1]} : vector<16x32xbf16> to vector<16x8xbf16>
    %cst_11 = arith.constant dense<0.000000e+00> : vector<16x8xf32>
    %33 = tpu.matmul %31, %32, %cst_11 {dimension_numbers = #tpu.dot_dimension_numbers<[1], [0], [0], [1], [0, 0, 1, 1], [], []>} : vector<16x16xbf16>, vector<16x8xbf16>, vector<16x8xf32> -> vector<16x8xf32>
    %34 = vector.extract_strided_slice %13 {offsets = [0, 8], sizes = [16, 8], strides = [1, 1]} : vector<16x32xbf16> to vector<16x8xbf16>
    %35 = vector.extract_strided_slice %15 {offsets = [0, 8], sizes = [16, 8], strides = [1, 1]} : vector<16x32xbf16> to vector<16x8xbf16>
    %cst_12 = arith.constant dense<0.000000e+00> : vector<16x16xf32>
    %36 = tpu.matmul %34, %35, %cst_12 {dimension_numbers = #tpu.dot_dimension_numbers<[1], [1], [0], [0], [0, 0, 1, 0], [], []>} : vector<16x8xbf16>, vector<16x8xbf16>, vector<16x16xf32> -> vector<16x16xf32>
    %cst_13 = arith.constant dense<0xFF800000> : vector<16xf32>
    %37 = vector.multi_reduction <maximumf>, %36, %cst_13 [1] : vector<16x16xf32> to vector<16xf32>
    %38 = vector.shape_cast %37 : vector<16xf32> to vector<16x1xf32>
    %39 = vector.broadcast %38 : vector<16x1xf32> to vector<16x16xf32>
    %40 = arith.subf %36, %39 : vector<16x16xf32>
    %41 = math.exp %40 : vector<16x16xf32>
    %cst_14 = arith.constant dense<0.000000e+00> : vector<16xf32>
    %42 = vector.multi_reduction <add>, %41, %cst_14 [1] : vector<16x16xf32> to vector<16xf32>
    %43 = vector.shape_cast %42 : vector<16xf32> to vector<16x1xf32>
    %44 = tpu.reciprocal %43 {approx = true} : vector<16x1xf32> -> vector<16x1xf32>
    %45 = vector.broadcast %44 : vector<16x1xf32> to vector<16x16xf32>
    %46 = arith.mulf %41, %45 : vector<16x16xf32>
    %47 = arith.truncf %46 : vector<16x16xf32> to vector<16x16xbf16>
    %48 = vector.extract_strided_slice %17 {offsets = [0, 8], sizes = [16, 8], strides = [1, 1]} : vector<16x32xbf16> to vector<16x8xbf16>
    %cst_15 = arith.constant dense<0.000000e+00> : vector<16x8xf32>
    %49 = tpu.matmul %47, %48, %cst_15 {dimension_numbers = #tpu.dot_dimension_numbers<[1], [0], [0], [1], [0, 0, 1, 1], [], []>} : vector<16x16xbf16>, vector<16x8xbf16>, vector<16x8xf32> -> vector<16x8xf32>
    %50 = vector.extract_strided_slice %13 {offsets = [0, 16], sizes = [16, 8], strides = [1, 1]} : vector<16x32xbf16> to vector<16x8xbf16>
    %51 = vector.extract_strided_slice %15 {offsets = [0, 16], sizes = [16, 8], strides = [1, 1]} : vector<16x32xbf16> to vector<16x8xbf16>
    %cst_16 = arith.constant dense<0.000000e+00> : vector<16x16xf32>
    %52 = tpu.matmul %50, %51, %cst_16 {dimension_numbers = #tpu.dot_dimension_numbers<[1], [1], [0], [0], [0, 0, 1, 0], [], []>} : vector<16x8xbf16>, vector<16x8xbf16>, vector<16x16xf32> -> vector<16x16xf32>
    %cst_17 = arith.constant dense<0xFF800000> : vector<16xf32>
    %53 = vector.multi_reduction <maximumf>, %52, %cst_17 [1] : vector<16x16xf32> to vector<16xf32>
    %54 = vector.shape_cast %53 : vector<16xf32> to vector<16x1xf32>
    %55 = vector.broadcast %54 : vector<16x1xf32> to vector<16x16xf32>
    %56 = arith.subf %52, %55 : vector<16x16xf32>
    %57 = math.exp %56 : vector<16x16xf32>
    %cst_18 = arith.constant dense<0.000000e+00> : vector<16xf32>
    %58 = vector.multi_reduction <add>, %57, %cst_18 [1] : vector<16x16xf32> to vector<16xf32>
    %59 = vector.shape_cast %58 : vector<16xf32> to vector<16x1xf32>
    %60 = tpu.reciprocal %59 {approx = true} : vector<16x1xf32> -> vector<16x1xf32>
    %61 = vector.broadcast %60 : vector<16x1xf32> to vector<16x16xf32>
    %62 = arith.mulf %57, %61 : vector<16x16xf32>
    %63 = arith.truncf %62 : vector<16x16xf32> to vector<16x16xbf16>
    %64 = vector.extract_strided_slice %17 {offsets = [0, 16], sizes = [16, 8], strides = [1, 1]} : vector<16x32xbf16> to vector<16x8xbf16>
    %cst_19 = arith.constant dense<0.000000e+00> : vector<16x8xf32>
    %65 = tpu.matmul %63, %64, %cst_19 {dimension_numbers = #tpu.dot_dimension_numbers<[1], [0], [0], [1], [0, 0, 1, 1], [], []>} : vector<16x16xbf16>, vector<16x8xbf16>, vector<16x8xf32> -> vector<16x8xf32>
    %66 = vector.extract_strided_slice %13 {offsets = [0, 24], sizes = [16, 8], strides = [1, 1]} : vector<16x32xbf16> to vector<16x8xbf16>
    %67 = vector.extract_strided_slice %15 {offsets = [0, 24], sizes = [16, 8], strides = [1, 1]} : vector<16x32xbf16> to vector<16x8xbf16>
    %cst_20 = arith.constant dense<0.000000e+00> : vector<16x16xf32>
    %68 = tpu.matmul %66, %67, %cst_20 {dimension_numbers = #tpu.dot_dimension_numbers<[1], [1], [0], [0], [0, 0, 1, 0], [], []>} : vector<16x8xbf16>, vector<16x8xbf16>, vector<16x16xf32> -> vector<16x16xf32>
    %cst_21 = arith.constant dense<0xFF800000> : vector<16xf32>
    %69 = vector.multi_reduction <maximumf>, %68, %cst_21 [1] : vector<16x16xf32> to vector<16xf32>
    %70 = vector.shape_cast %69 : vector<16xf32> to vector<16x1xf32>
    %71 = vector.broadcast %70 : vector<16x1xf32> to vector<16x16xf32>
    %72 = arith.subf %68, %71 : vector<16x16xf32>
    %73 = math.exp %72 : vector<16x16xf32>
    %cst_22 = arith.constant dense<0.000000e+00> : vector<16xf32>
    %74 = vector.multi_reduction <add>, %73, %cst_22 [1] : vector<16x16xf32> to vector<16xf32>
    %75 = vector.shape_cast %74 : vector<16xf32> to vector<16x1xf32>
    %76 = tpu.reciprocal %75 {approx = true} : vector<16x1xf32> -> vector<16x1xf32>
    %77 = vector.broadcast %76 : vector<16x1xf32> to vector<16x16xf32>
    %78 = arith.mulf %73, %77 : vector<16x16xf32>
    %79 = arith.truncf %78 : vector<16x16xf32> to vector<16x16xbf16>
    %80 = vector.extract_strided_slice %17 {offsets = [0, 24], sizes = [16, 8], strides = [1, 1]} : vector<16x32xbf16> to vector<16x8xbf16>
    %cst_23 = arith.constant dense<0.000000e+00> : vector<16x8xf32>
    %81 = tpu.matmul %79, %80, %cst_23 {dimension_numbers = #tpu.dot_dimension_numbers<[1], [0], [0], [1], [0, 0, 1, 1], [], []>} : vector<16x16xbf16>, vector<16x8xbf16>, vector<16x8xf32> -> vector<16x8xf32>
    %82 = tpu.concatenate %33, %49, %65, %81 in 1 : vector<16x8xf32>, vector<16x8xf32>, vector<16x8xf32>, vector<16x8xf32> -> vector<16x32xf32>
    %83 = arith.truncf %82 : vector<16x32xf32> to vector<16x32xbf16>
    %c0_24 = arith.constant 0 : index
    %c0_25 = arith.constant 0 : index
    %c0_26 = arith.constant 0 : index
    %84 = vector.load %arg5[%c0_24, %c0_25, %c0_26] : memref<1x32x32xbf16, #tpu.memory_space<vmem>>, vector<1x32x32xbf16>
    %85 = vector.shape_cast %84 : vector<1x32x32xbf16> to vector<32x32xbf16>
    %cst_27 = arith.constant dense<0.000000e+00> : vector<16x32xf32>
    %86 = tpu.matmul %83, %85, %cst_27 {dimension_numbers = #tpu.dot_dimension_numbers<[1], [0], [0], [1], [0, 0, 1, 1], [], []>} : vector<16x32xbf16>, vector<32x32xbf16>, vector<16x32xf32> -> vector<16x32xf32>
    %c0_28 = arith.constant 0 : index
    %c0_29 = arith.constant 0 : index
    %c0_30 = arith.constant 0 : index
    %87 = vector.load %arg6[%c0_28, %c0_29, %c0_30] : memref<1x1x32xf32, #tpu.memory_space<vmem>>, vector<1x1x32xf32>
    %88 = vector.shape_cast %87 : vector<1x1x32xf32> to vector<1x32xf32>
    %89 = vector.broadcast %88 : vector<1x32xf32> to vector<16x32xf32>
    %90 = arith.addf %86, %89 : vector<16x32xf32>
    %91 = arith.addf %3, %90 : vector<16x32xf32>
    %c0_31 = arith.constant 0 : index
    %c0_32 = arith.constant 0 : index
    %c0_33 = arith.constant 0 : index
    %92 = vector.load %arg7[%c0_31, %c0_32, %c0_33] : memref<1x1x32xf32, #tpu.memory_space<vmem>>, vector<1x1x32xf32>
    %93 = vector.shape_cast %92 : vector<1x1x32xf32> to vector<1x32xf32>
    %c0_34 = arith.constant 0 : index
    %c0_35 = arith.constant 0 : index
    %c0_36 = arith.constant 0 : index
    %94 = vector.load %arg8[%c0_34, %c0_35, %c0_36] : memref<1x1x32xf32, #tpu.memory_space<vmem>>, vector<1x1x32xf32>
    %95 = vector.shape_cast %94 : vector<1x1x32xf32> to vector<1x32xf32>
    %cst_37 = arith.constant dense<0.000000e+00> : vector<16xf32>
    %96 = vector.multi_reduction <add>, %91, %cst_37 [1] : vector<16x32xf32> to vector<16xf32>
    %97 = vector.shape_cast %96 : vector<16xf32> to vector<16x1xf32>
    %cst_38 = arith.constant 3.200000e+01 : f32
    %98 = vector.broadcast %cst_38 : f32 to vector<16x1xf32>
    %99 = arith.divf %97, %98 : vector<16x1xf32>
    %100 = vector.broadcast %99 : vector<16x1xf32> to vector<16x32xf32>
    %101 = arith.subf %91, %100 : vector<16x32xf32>
    %102 = arith.mulf %101, %101 : vector<16x32xf32>
    %cst_39 = arith.constant dense<0.000000e+00> : vector<16xf32>
    %103 = vector.multi_reduction <add>, %102, %cst_39 [1] : vector<16x32xf32> to vector<16xf32>
    %104 = vector.shape_cast %103 : vector<16xf32> to vector<16x1xf32>
    %cst_40 = arith.constant 3.200000e+01 : f32
    %105 = vector.broadcast %cst_40 : f32 to vector<16x1xf32>
    %106 = arith.divf %104, %105 : vector<16x1xf32>
    %107 = vector.broadcast %99 : vector<16x1xf32> to vector<16x32xf32>
    %108 = arith.subf %91, %107 : vector<16x32xf32>
    %cst_41 = arith.constant 9.99999974E-6 : f32
    %109 = vector.broadcast %cst_41 : f32 to vector<16x1xf32>
    %110 = arith.addf %106, %109 : vector<16x1xf32>
    %111 = math.rsqrt %110 : vector<16x1xf32>
    %112 = vector.broadcast %111 : vector<16x1xf32> to vector<16x32xf32>
    %113 = arith.mulf %108, %112 : vector<16x32xf32>
    %114 = vector.broadcast %93 : vector<1x32xf32> to vector<16x32xf32>
    %115 = arith.mulf %113, %114 : vector<16x32xf32>
    %116 = vector.broadcast %95 : vector<1x32xf32> to vector<16x32xf32>
    %117 = arith.addf %115, %116 : vector<16x32xf32>
    %118 = arith.truncf %117 : vector<16x32xf32> to vector<16x32xbf16>
    %c0_42 = arith.constant 0 : index
    %c0_43 = arith.constant 0 : index
    %c0_44 = arith.constant 0 : index
    %119 = vector.load %arg9[%c0_42, %c0_43, %c0_44] : memref<1x32x64xbf16, #tpu.memory_space<vmem>>, vector<1x32x64xbf16>
    %120 = vector.shape_cast %119 : vector<1x32x64xbf16> to vector<32x64xbf16>
    %cst_45 = arith.constant dense<0.000000e+00> : vector<16x64xf32>
    %121 = tpu.matmul %118, %120, %cst_45 {dimension_numbers = #tpu.dot_dimension_numbers<[1], [0], [0], [1], [0, 0, 1, 1], [], []>} : vector<16x32xbf16>, vector<32x64xbf16>, vector<16x64xf32> -> vector<16x64xf32>
    %c0_46 = arith.constant 0 : index
    %c0_47 = arith.constant 0 : index
    %c0_48 = arith.constant 0 : index
    %122 = vector.load %arg10[%c0_46, %c0_47, %c0_48] : memref<1x1x64xf32, #tpu.memory_space<vmem>>, vector<1x1x64xf32>
    %123 = vector.shape_cast %122 : vector<1x1x64xf32> to vector<1x64xf32>
    %124 = vector.broadcast %123 : vector<1x64xf32> to vector<16x64xf32>
    %125 = arith.addf %121, %124 : vector<16x64xf32>
    %cst_49 = arith.constant 0.000000e+00 : f32
    %126 = vector.broadcast %cst_49 : f32 to vector<16x64xf32>
    %127 = arith.maximumf %125, %126 : vector<16x64xf32>
    %128 = arith.truncf %127 : vector<16x64xf32> to vector<16x64xbf16>
    %c0_50 = arith.constant 0 : index
    %c0_51 = arith.constant 0 : index
    %c0_52 = arith.constant 0 : index
    %129 = vector.load %arg11[%c0_50, %c0_51, %c0_52] : memref<1x64x32xbf16, #tpu.memory_space<vmem>>, vector<1x64x32xbf16>
    %130 = vector.shape_cast %129 : vector<1x64x32xbf16> to vector<64x32xbf16>
    %cst_53 = arith.constant dense<0.000000e+00> : vector<16x32xf32>
    %131 = tpu.matmul %128, %130, %cst_53 {dimension_numbers = #tpu.dot_dimension_numbers<[1], [0], [0], [1], [0, 0, 1, 1], [], []>} : vector<16x64xbf16>, vector<64x32xbf16>, vector<16x32xf32> -> vector<16x32xf32>
    %c0_54 = arith.constant 0 : index
    %c0_55 = arith.constant 0 : index
    %c0_56 = arith.constant 0 : index
    %132 = vector.load %arg12[%c0_54, %c0_55, %c0_56] : memref<1x1x32xf32, #tpu.memory_space<vmem>>, vector<1x1x32xf32>
    %133 = vector.shape_cast %132 : vector<1x1x32xf32> to vector<1x32xf32>
    %134 = vector.broadcast %133 : vector<1x32xf32> to vector<16x32xf32>
    %135 = arith.addf %131, %134 : vector<16x32xf32>
    %136 = arith.addf %117, %135 : vector<16x32xf32>
    %c0_57 = arith.constant 0 : index
    %c0_58 = arith.constant 0 : index
    %c0_59 = arith.constant 0 : index
    %137 = vector.load %arg13[%c0_57, %c0_58, %c0_59] : memref<1x1x32xf32, #tpu.memory_space<vmem>>, vector<1x1x32xf32>
    %138 = vector.shape_cast %137 : vector<1x1x32xf32> to vector<1x32xf32>
    %c0_60 = arith.constant 0 : index
    %c0_61 = arith.constant 0 : index
    %c0_62 = arith.constant 0 : index
    %139 = vector.load %arg14[%c0_60, %c0_61, %c0_62] : memref<1x1x32xf32, #tpu.memory_space<vmem>>, vector<1x1x32xf32>
    %140 = vector.shape_cast %139 : vector<1x1x32xf32> to vector<1x32xf32>
    %cst_63 = arith.constant dense<0.000000e+00> : vector<16xf32>
    %141 = vector.multi_reduction <add>, %136, %cst_63 [1] : vector<16x32xf32> to vector<16xf32>
    %142 = vector.shape_cast %141 : vector<16xf32> to vector<16x1xf32>
    %cst_64 = arith.constant 3.200000e+01 : f32
    %143 = vector.broadcast %cst_64 : f32 to vector<16x1xf32>
    %144 = arith.divf %142, %143 : vector<16x1xf32>
    %145 = vector.broadcast %144 : vector<16x1xf32> to vector<16x32xf32>
    %146 = arith.subf %136, %145 : vector<16x32xf32>
    %147 = arith.mulf %146, %146 : vector<16x32xf32>
    %cst_65 = arith.constant dense<0.000000e+00> : vector<16xf32>
    %148 = vector.multi_reduction <add>, %147, %cst_65 [1] : vector<16x32xf32> to vector<16xf32>
    %149 = vector.shape_cast %148 : vector<16xf32> to vector<16x1xf32>
    %cst_66 = arith.constant 3.200000e+01 : f32
    %150 = vector.broadcast %cst_66 : f32 to vector<16x1xf32>
    %151 = arith.divf %149, %150 : vector<16x1xf32>
    %152 = vector.broadcast %144 : vector<16x1xf32> to vector<16x32xf32>
    %153 = arith.subf %136, %152 : vector<16x32xf32>
    %cst_67 = arith.constant 9.99999974E-6 : f32
    %154 = vector.broadcast %cst_67 : f32 to vector<16x1xf32>
    %155 = arith.addf %151, %154 : vector<16x1xf32>
    %156 = math.rsqrt %155 : vector<16x1xf32>
    %157 = vector.broadcast %156 : vector<16x1xf32> to vector<16x32xf32>
    %158 = arith.mulf %153, %157 : vector<16x32xf32>
    %159 = vector.broadcast %138 : vector<1x32xf32> to vector<16x32xf32>
    %160 = arith.mulf %158, %159 : vector<16x32xf32>
    %161 = vector.broadcast %140 : vector<1x32xf32> to vector<16x32xf32>
    %162 = arith.addf %160, %161 : vector<16x32xf32>
    %c0_68 = arith.constant 0 : index
    %c0_69 = arith.constant 0 : index
    %163 = vector.load %arg18[%c0_68, %c0_69] : memref<16x32xf32, #tpu.memory_space<vmem>>, vector<16x32xf32>
    tpu.vector_store %arg18[%c0_68, %c0_69], %162 {strides = array<i32>} : memref<16x32xf32, #tpu.memory_space<vmem>>, vector<16x32xf32>,
    %c1_i32 = arith.constant 1 : i32
    %164 = arith.cmpi eq, %arg1, %c1_i32 : i32
    %165 = arith.extui %164 : i1 to i32
    %c0_i32_70 = arith.constant 0 : i32
    %166 = arith.cmpi ne, %165, %c0_i32_70 : i32
    scf.if %166 {
      %167 = arith.truncf %162 : vector<16x32xf32> to vector<16x32xbf16>
      %c0_71 = arith.constant 0 : index
      %c0_72 = arith.constant 0 : index
      %168 = vector.load %arg15[%c0_71, %c0_72] : memref<32x5xbf16, #tpu.memory_space<vmem>>, vector<32x5xbf16>
      %cst_73 = arith.constant dense<0.000000e+00> : vector<16x5xf32>
      %169 = tpu.matmul %167, %168, %cst_73 {dimension_numbers = #tpu.dot_dimension_numbers<[1], [0], [0], [1], [0, 0, 1, 1], [], []>} : vector<16x32xbf16>, vector<32x5xbf16>, vector<16x5xf32> -> vector<16x5xf32>
      %c0_74 = arith.constant 0 : index
      %c0_75 = arith.constant 0 : index
      %170 = vector.load %arg16[%c0_74, %c0_75] : memref<1x5xf32, #tpu.memory_space<vmem>>, vector<1x5xf32>
      %171 = vector.broadcast %170 : vector<1x5xf32> to vector<16x5xf32>
      %172 = arith.addf %169, %171 : vector<16x5xf32>
      %c0_76 = arith.constant 0 : index
      %c0_77 = arith.constant 0 : index
      %c0_78 = arith.constant 0 : index
      %173 = vector.load %arg17[%c0_76, %c0_77, %c0_78] : memref<1x16x5xf32, #tpu.memory_space<vmem>>, vector<1x16x5xf32>
      %174 = vector.shape_cast %173 : vector<1x16x5xf32> to vector<16x5xf32>
      %175 = vector.shape_cast %172 : vector<16x5xf32> to vector<1x16x5xf32>
      tpu.vector_store %arg17[%c0_76, %c0_77, %c0_78], %175 {strides = array<i32>} : memref<1x16x5xf32, #tpu.memory_space<vmem>>, vector<1x16x5xf32>,
    } else {
    }
    return
  }
  func.func @transform_0(%arg0: i32, %arg1: i32) -> (i32, i32, i32) {
    %c0_i32 = arith.constant 0 : i32
    %c0_i32_0 = arith.constant 0 : i32
    %c0_i32_1 = arith.constant 0 : i32
    return %arg0, %c0_i32, %c0_i32_0 : i32, i32, i32
  }
  func.func @transform_1(%arg0: i32, %arg1: i32) -> (i32, i32, i32) {
    %c0_i32 = arith.constant 0 : i32
    %c0_i32_0 = arith.constant 0 : i32
    %c0_i32_1 = arith.constant 0 : i32
    return %arg1, %c0_i32, %c0_i32_0 : i32, i32, i32
  }
  func.func @transform_2(%arg0: i32, %arg1: i32) -> (i32, i32, i32) {
    %c0_i32 = arith.constant 0 : i32
    %c0_i32_0 = arith.constant 0 : i32
    %c0_i32_1 = arith.constant 0 : i32
    return %arg1, %c0_i32, %c0_i32_0 : i32, i32, i32
  }
  func.func @transform_3(%arg0: i32, %arg1: i32) -> (i32, i32, i32) {
    %c0_i32 = arith.constant 0 : i32
    %c0_i32_0 = arith.constant 0 : i32
    %c0_i32_1 = arith.constant 0 : i32
    return %arg1, %c0_i32, %c0_i32_0 : i32, i32, i32
  }
  func.func @transform_4(%arg0: i32, %arg1: i32) -> (i32, i32, i32) {
    %c0_i32 = arith.constant 0 : i32
    %c0_i32_0 = arith.constant 0 : i32
    %c0_i32_1 = arith.constant 0 : i32
    return %arg1, %c0_i32, %c0_i32_0 : i32, i32, i32
  }
  func.func @transform_5(%arg0: i32, %arg1: i32) -> (i32, i32, i32) {
    %c0_i32 = arith.constant 0 : i32
    %c0_i32_0 = arith.constant 0 : i32
    %c0_i32_1 = arith.constant 0 : i32
    return %arg1, %c0_i32, %c0_i32_0 : i32, i32, i32
  }
  func.func @transform_6(%arg0: i32, %arg1: i32) -> (i32, i32, i32) {
    %c0_i32 = arith.constant 0 : i32
    %c0_i32_0 = arith.constant 0 : i32
    %c0_i32_1 = arith.constant 0 : i32
    return %arg1, %c0_i32, %c0_i32_0 : i32, i32, i32
  }
  func.func @transform_7(%arg0: i32, %arg1: i32) -> (i32, i32, i32) {
    %c0_i32 = arith.constant 0 : i32
    %c0_i32_0 = arith.constant 0 : i32
    %c0_i32_1 = arith.constant 0 : i32
    return %arg1, %c0_i32, %c0_i32_0 : i32, i32, i32
  }
  func.func @transform_8(%arg0: i32, %arg1: i32) -> (i32, i32, i32) {
    %c0_i32 = arith.constant 0 : i32
    %c0_i32_0 = arith.constant 0 : i32
    %c0_i32_1 = arith.constant 0 : i32
    return %arg1, %c0_i32, %c0_i32_0 : i32, i32, i32
  }
  func.func @transform_9(%arg0: i32, %arg1: i32) -> (i32, i32, i32) {
    %c0_i32 = arith.constant 0 : i32
    %c0_i32_0 = arith.constant 0 : i32
    %c0_i32_1 = arith.constant 0 : i32
    return %arg1, %c0_i32, %c0_i32_0 : i32, i32, i32
  }
  func.func @transform_10(%arg0: i32, %arg1: i32) -> (i32, i32, i32) {
    %c0_i32 = arith.constant 0 : i32
    %c0_i32_0 = arith.constant 0 : i32
    %c0_i32_1 = arith.constant 0 : i32
    return %arg1, %c0_i32, %c0_i32_0 : i32, i32, i32
  }
  func.func @transform_11(%arg0: i32, %arg1: i32) -> (i32, i32, i32) {
    %c0_i32 = arith.constant 0 : i32
    %c0_i32_0 = arith.constant 0 : i32
    %c0_i32_1 = arith.constant 0 : i32
    return %arg1, %c0_i32, %c0_i32_0 : i32, i32, i32
  }
  func.func @transform_12(%arg0: i32, %arg1: i32) -> (i32, i32, i32) {
    %c0_i32 = arith.constant 0 : i32
    %c0_i32_0 = arith.constant 0 : i32
    %c0_i32_1 = arith.constant 0 : i32
    return %arg1, %c0_i32, %c0_i32_0 : i32, i32, i32
  }
  func.func @transform_13(%arg0: i32, %arg1: i32) -> (i32, i32) {
    %c0_i32 = arith.constant 0 : i32
    %c0_i32_0 = arith.constant 0 : i32
    %c0_i32_1 = arith.constant 0 : i32
    return %c0_i32, %c0_i32_0 : i32, i32
  }
  func.func @transform_14(%arg0: i32, %arg1: i32) -> (i32, i32) {
    %c0_i32 = arith.constant 0 : i32
    %c0_i32_0 = arith.constant 0 : i32
    %c0_i32_1 = arith.constant 0 : i32
    return %c0_i32, %c0_i32_0 : i32, i32
  }
  func.func @transform_15(%arg0: i32, %arg1: i32) -> (i32, i32, i32) {
    %c0_i32 = arith.constant 0 : i32
    %c0_i32_0 = arith.constant 0 : i32
    %c0_i32_1 = arith.constant 0 : i32
    return %arg0, %c0_i32, %c0_i32_0 : i32, i32, i32
  }
}

</mosaic_0001>

<llo_original>
// kernel: sacall_forward.2
$region0: #{sacall_forward.2}
  #allocation0 [shape = 'u32[]', space=smem, size = 0x4, offset = 0x4, fixed_abs, tag = 'smem constant byte address 0x4 - core index']
  #allocation1 [shape = 'u32[144,128]{1,0:T(1,128)}', space=vmem, size = 0x12000, scoped, tag = 'internal scratch']
  %s0 = inlined_call_operand.vmem [shape: f32[32,3], index: 0, kind: input, shape index: {}]
  %s1 = inlined_call_operand.vmem [shape: f32[32,3], index: 1, kind: input, shape index: {}]
  %s2 = inlined_call_operand.vmem [shape: f32[3,16], index: 2, kind: input, shape index: {}]
  %s3 = inlined_call_operand.vmem [shape: f32[1,16], index: 3, kind: input, shape index: {}]
  %s4 = inlined_call_operand.vmem [shape: f32[3,16,32], index: 4, kind: input, shape index: {}]
  %s5 = inlined_call_operand.vmem [shape: f32[1,32], index: 5, kind: input, shape index: {}]
  %s6 = inlined_call_operand.vmem [shape: f32[32,32], index: 6, kind: input, shape index: {}]
  %s7 = inlined_call_operand.vmem [shape: f32[32,32], index: 7, kind: output, shape index: {}]
  %s8 = sld [smem:[#allocation0]]
  $region38: #{sacall_forward.2} parent=0
    _
  %s10 = ssub.s32 1, %s8
  %s11 = scalar_select 0, %s10, %s8
  // Predicated region
  $region2: #{sacall_forward.2} parent=0 // pred_check
    _
  $region3: #{sacall_forward.2} parent=0 // pred_check_branch
    %13 = sbr.rel (0) target = $region5
  $region4: #{sacall_forward.2} parent=0 // pred_region
    _
  $region5: #{sacall_forward.2} parent=0 // pred_fallthru
    _
  // Predicated region
  $region6: #{sacall_forward.2} parent=0 // pred_check
    _
  $region7: #{sacall_forward.2} parent=0 // pred_check_branch
    %15 = sbr.rel (0) target = $region9
  $region8: #{sacall_forward.2} parent=0 // pred_region
    _
  $region9: #{sacall_forward.2} parent=0 // pred_fallthru
    _
  // Predicated region
  $region10: #{sacall_forward.2} parent=0 // pred_check
    _
  $region11: #{sacall_forward.2} parent=0 // pred_check_branch
    %17 = sbr.rel (0) target = $region13
  $region12: #{sacall_forward.2} parent=0 // pred_region
    _
  $region13: #{sacall_forward.2} parent=0 // pred_fallthru
    _
  // Predicated region
  $region14: #{sacall_forward.2} parent=0 // pred_check
    _
  $region15: #{sacall_forward.2} parent=0 // pred_check_branch
    %19 = sbr.rel (0) target = $region17
  $region16: #{sacall_forward.2} parent=0 // pred_region
    _
  $region17: #{sacall_forward.2} parent=0 // pred_fallthru
    _
  // Predicated region
  $region18: #{sacall_forward.2} parent=0 // pred_check
    _
  $region19: #{sacall_forward.2} parent=0 // pred_check_branch
    %21 = sbr.rel (0) target = $region21
  $region20: #{sacall_forward.2} parent=0 // pred_region
    _
  $region21: #{sacall_forward.2} parent=0 // pred_fallthru
    _
  // Predicated region
  $region22: #{sacall_forward.2} parent=0 // pred_check
    _
  $region23: #{sacall_forward.2} parent=0 // pred_check_branch
    %23 = sbr.rel (0) target = $region25
  $region24: #{sacall_forward.2} parent=0 // pred_region
    _
  $region25: #{sacall_forward.2} parent=0 // pred_fallthru
    _
  // Predicated region
  $region26: #{sacall_forward.2} parent=0 // pred_check
    _
  $region27: #{sacall_forward.2} parent=0 // pred_check_branch
    %25 = sbr.rel (0) target = $region29
  $region28: #{sacall_forward.2} parent=0 // pred_region
    _
  $region29: #{sacall_forward.2} parent=0 // pred_fallthru
    _
  %v26 = vld [vmem:[%s0] sm:$0xff]
  %v27 = vld [vmem:[%s0 + $0x8] sm:$0xff]
  %v28 = vld [vmem:[%s0 + $0x10] sm:$0xff]
  %v29 = vld [vmem:[%s0 + $0x18] sm:$0xff]
  %v30 = vld [vmem:[%s1] sm:$0xff]
  %v31 = vld [vmem:[%s1 + $0x8] sm:$0xff]
  %v32 = vld [vmem:[%s1 + $0x10] sm:$0xff]
  %v33 = vld [vmem:[%s1 + $0x18] sm:$0xff]
  %v34 = vld [vmem:[%s2] sm:$0x7]
  %v35 = vld [vmem:[%s3] sm:$0x1]
  %v37 = vlaneseq
  %v38 = vshrl.u32 %v37, 7
  %v39 = vsub.s32 0, %v38
  %v40 = vrot.slane %v35, %v39
  %vm42 = vcmask 23552
  %v44 = vsel %vm42, %v26, 0
  %v47 = vsel %vm42, %v27, 0
  %v50 = vsel %vm42, %v28, 0
  %v53 = vsel %vm42, %v29, 0
  %vm55 = vcmask 1042432
  %v57 = vsel %vm55, %v34, 0
  %59 = vmatprep.subr.mxu0 0.0
  %60 = vmatpush1.msra.mxu0 %v57
  %61 = vmatprep.subr.mxu0 0.0
  %62 = vmatpush1.msra.mxu0 0.0
  %63 = vmatprep.subr.mxu0 0.0
  %64 = vmatpush1.msra.mxu0 0.0
  %65 = vmatprep.subr.mxu0 0.0
  %66 = vmatpush1.msra.mxu0 0.0
  %67 = vmatprep.subr.mxu0 0.0
  %68 = vmatpush1.msra.mxu0 0.0
  %69 = vmatprep.subr.mxu0 0.0
  %70 = vmatpush1.msra.mxu0 0.0
  %71 = vmatprep.subr.mxu0 0.0
  %72 = vmatpush1.msra.mxu0 0.0
  %73 = vmatprep.subr.mxu0 0.0
  %74 = vmatpush1.msra.mxu0 0.0
  %75 = vmatprep.subr.mxu0 0.0
  %76 = vmatpush1.msra.mxu0 0.0
  %77 = vmatprep.subr.mxu0 0.0
  %78 = vmatpush1.msra.mxu0 0.0
  %79 = vmatprep.subr.mxu0 0.0
  %80 = vmatpush1.msra.mxu0 0.0
  %81 = vmatprep.subr.mxu0 0.0
  %82 = vmatpush1.msra.mxu0 0.0
  %83 = vmatprep.subr.mxu0 0.0
  %84 = vmatpush1.msra.mxu0 0.0
  %85 = vmatprep.subr.mxu0 0.0
  %86 = vmatpush1.msra.mxu0 0.0
  %87 = vmatprep.subr.mxu0 0.0
  %88 = vmatpush1.msra.mxu0 0.0
  %89 = vmatprep.subr.mxu0 0.0
  %90 = vmatpush1.msra.mxu0 0.0
  %91 = vmatprep.subr.mxu0 0.0
  %92 = vmatpush1.msra.mxu0 0.0
  %93 = vmatprep.subr.mxu0 0.0
  %94 = vmatpush1.msra.mxu0 0.0
  %95 = vmatprep.subr.mxu0 0.0
  %96 = vmatpush1.msra.mxu0 0.0
  %97 = vmatprep.subr.mxu0 0.0
  %98 = vmatpush1.msra.mxu0 0.0
  %99 = vmatprep.subr.mxu0 0.0
  %100 = vmatpush1.msra.mxu0 0.0
  %101 = vmatprep.subr.mxu0 0.0
  %102 = vmatpush1.msra.mxu0 0.0
  %103 = vmatprep.subr.mxu0 0.0
  %104 = vmatpush1.msra.mxu0 0.0
  %105 = vmatprep.subr.mxu0 0.0
  %106 = vmatpush1.msra.mxu0 0.0
  %107 = vmatprep.subr.mxu0 0.0
  %108 = vmatpush1.msra.mxu0 0.0
  %109 = vmatprep.subr.mxu0 0.0
  %110 = vmatpush1.msra.mxu0 0.0
  %111 = vmatprep.subr.mxu0 0.0
  %112 = vmatpush1.msra.mxu0 0.0
  %113 = vmatprep.subr.mxu0 0.0
  %114 = vmatpush1.msra.mxu0 0.0
  %115 = vmatprep.subr.mxu0 0.0
  %116 = vmatpush1.msra.mxu0 0.0
  %117 = vmatprep.subr.mxu0 0.0
  %118 = vmatpush1.msra.mxu0 0.0
  %119 = vmatprep.subr.mxu0 0.0
  %120 = vmatpush1.msra.mxu0 0.0
  %121 = vmatprep.subr.mxu0 0.0
  %122 = vmatpush1.msra.mxu0 0.0
  %123 = vmatprep.mubr.f32.mxu0 0.0
  %124 = vmatmul.mubr.f32.gmra.mrb[0].mxu0 %v44
  %v125 = vpop.f32.mrb[0].mxu0
  %v126 = vadd.f32 %v40, %v125
  %v127 = vpop.f32.mrb[0].mxu0
  %128 = vmatprep.mubr.f32.mxu0 0.0
  %129 = vmatmul.mubr.f32.gmra.mrb[0].mxu0 %v47
  %v130 = vpop.f32.mrb[0].mxu0
  %v131 = vadd.f32 %v40, %v130
  %v132 = vpop.f32.mrb[0].mxu0
  %133 = vmatprep.mubr.f32.mxu0 0.0
  %134 = vmatmul.mubr.f32.gmra.mrb[0].mxu0 %v50
  %v135 = vpop.f32.mrb[0].mxu0
  %v136 = vadd.f32 %v40, %v135
  %v137 = vpop.f32.mrb[0].mxu0
  %138 = vmatprep.mubr.f32.mxu0 0.0
  %139 = vmatmul.mubr.f32.gmra.mrb[0].mxu0 %v53
  %v140 = vpop.f32.mrb[0].mxu0
  %v141 = vadd.f32 %v40, %v140
  %v142 = vpop.f32.mrb[0].mxu0
  %143 = vdwg.mxu0
  %v144 = vmax.f32 %v126, 0.0
  %v145 = vmax.f32 %v131, 0.0
  %v146 = vmax.f32 %v136, 0.0
  %v147 = vmax.f32 %v141, 0.0
  %v149 = vsel %vm42, %v30, 0
  %v152 = vsel %vm42, %v31, 0
  %v155 = vsel %vm42, %v32, 0
  %v158 = vsel %vm42, %v33, 0
  %160 = vmatprep.subr.mxu0 0.0
  %161 = vmatpush1.msra.mxu0 %v57
  %162 = vmatprep.subr.mxu0 0.0
  %163 = vmatpush1.msra.mxu0 0.0
  %164 = vmatprep.subr.mxu0 0.0
  %165 = vmatpush1.msra.mxu0 0.0
  %166 = vmatprep.subr.mxu0 0.0
  %167 = vmatpush1.msra.mxu0 0.0
  %168 = vmatprep.subr.mxu0 0.0
  %169 = vmatpush1.msra.mxu0 0.0
  %170 = vmatprep.subr.mxu0 0.0
  %171 = vmatpush1.msra.mxu0 0.0
  %172 = vmatprep.subr.mxu0 0.0
  %173 = vmatpush1.msra.mxu0 0.0
  %174 = vmatprep.subr.mxu0 0.0
  %175 = vmatpush1.msra.mxu0 0.0
  %176 = vmatprep.subr.mxu0 0.0
  %177 = vmatpush1.msra.mxu0 0.0
  %178 = vmatprep.subr.mxu0 0.0
  %179 = vmatpush1.msra.mxu0 0.0
  %180 = vmatprep.subr.mxu0 0.0
  %181 = vmatpush1.msra.mxu0 0.0
  %182 = vmatprep.subr.mxu0 0.0
  %183 = vmatpush1.msra.mxu0 0.0
  %184 = vmatprep.subr.mxu0 0.0
  %185 = vmatpush1.msra.mxu0 0.0
  %186 = vmatprep.subr.mxu0 0.0
  %187 = vmatpush1.msra.mxu0 0.0
  %188 = vmatprep.subr.mxu0 0.0
  %189 = vmatpush1.msra.mxu0 0.0
  %190 = vmatprep.subr.mxu0 0.0
  %191 = vmatpush1.msra.mxu0 0.0
  %192 = vmatprep.subr.mxu0 0.0
  %193 = vmatpush1.msra.mxu0 0.0
  %194 = vmatprep.subr.mxu0 0.0
  %195 = vmatpush1.msra.mxu0 0.0
  %196 = vmatprep.subr.mxu0 0.0
  %197 = vmatpush1.msra.mxu0 0.0
  %198 = vmatprep.subr.mxu0 0.0
  %199 = vmatpush1.msra.mxu0 0.0
  %200 = vmatprep.subr.mxu0 0.0
  %201 = vmatpush1.msra.mxu0 0.0
  %202 = vmatprep.subr.mxu0 0.0
  %203 = vmatpush1.msra.mxu0 0.0
  %204 = vmatprep.subr.mxu0 0.0
  %205 = vmatpush1.msra.mxu0 0.0
  %206 = vmatprep.subr.mxu0 0.0
  %207 = vmatpush1.msra.mxu0 0.0
  %208 = vmatprep.subr.mxu0 0.0
  %209 = vmatpush1.msra.mxu0 0.0
  %210 = vmatprep.subr.mxu0 0.0
  %211 = vmatpush1.msra.mxu0 0.0
  %212 = vmatprep.subr.mxu0 0.0
  %213 = vmatpush1.msra.mxu0 0.0
  %214 = vmatprep.subr.mxu0 0.0
  %215 = vmatpush1.msra.mxu0 0.0
  %216 = vmatprep.subr.mxu0 0.0
  %217 = vmatpush1.msra.mxu0 0.0
  %218 = vmatprep.subr.mxu0 0.0
  %219 = vmatpush1.msra.mxu0 0.0
  %220 = vmatprep.subr.mxu0 0.0
  %221 = vmatpush1.msra.mxu0 0.0
  %222 = vmatprep.subr.mxu0 0.0
  %223 = vmatpush1.msra.mxu0 0.0
  %224 = vmatprep.mubr.f32.mxu0 0.0
  %225 = vmatmul.mubr.f32.gmra.mrb[0].mxu0 %v149
  %v226 = vpop.f32.mrb[0].mxu0
  %v227 = vadd.f32 %v40, %v226
  %v228 = vpop.f32.mrb[0].mxu0
  %229 = vmatprep.mubr.f32.mxu0 0.0
  %230 = vmatmul.mubr.f32.gmra.mrb[0].mxu0 %v152
  %v231 = vpop.f32.mrb[0].mxu0
  %v232 = vadd.f32 %v40, %v231
  %v233 = vpop.f32.mrb[0].mxu0
  %234 = vmatprep.mubr.f32.mxu0 0.0
  %235 = vmatmul.mubr.f32.gmra.mrb[0].mxu0 %v155
  %v236 = vpop.f32.mrb[0].mxu0
  %v237 = vadd.f32 %v40, %v236
  %v238 = vpop.f32.mrb[0].mxu0
  %239 = vmatprep.mubr.f32.mxu0 0.0
  %240 = vmatmul.mubr.f32.gmra.mrb[0].mxu0 %v158
  %v241 = vpop.f32.mrb[0].mxu0
  %v242 = vadd.f32 %v40, %v241
  %v243 = vpop.f32.mrb[0].mxu0
  %244 = vdwg.mxu0
  %v245 = vmax.f32 %v227, 0.0
  %v246 = vmax.f32 %v232, 0.0
  %v247 = vmax.f32 %v237, 0.0
  %v248 = vmax.f32 %v242, 0.0
  %v249 = vld [vmem:[%s4] sm:$0xff]
  %v250 = vld [vmem:[%s4 + $0x8] sm:$0xff]
  %vm251 = vcmask 130048
  %v253 = vsel %vm251, %v245, 0
  %v256 = vsel %vm251, %v246, 0
  %v259 = vsel %vm251, %v247, 0
  %v262 = vsel %vm251, %v248, 0
  %264 = vmatprep.subr.mxu0 0.0
  %265 = vmatpush1.msra.mxu0 %v249
  %266 = vmatprep.subr.mxu0 0.0
  %267 = vmatpush1.msra.mxu0 %v250
  %268 = vmatprep.subr.mxu0 0.0
  %269 = vmatpush1.msra.mxu0 0.0
  %270 = vmatprep.subr.mxu0 0.0
  %271 = vmatpush1.msra.mxu0 0.0
  %272 = vmatprep.subr.mxu0 0.0
  %273 = vmatpush1.msra.mxu0 0.0
  %274 = vmatprep.subr.mxu0 0.0
  %275 = vmatpush1.msra.mxu0 0.0
  %276 = vmatprep.subr.mxu0 0.0
  %277 = vmatpush1.msra.mxu0 0.0
  %278 = vmatprep.subr.mxu0 0.0
  %279 = vmatpush1.msra.mxu0 0.0
  %280 = vmatprep.subr.mxu0 0.0
  %281 = vmatpush1.msra.mxu0 0.0
  %282 = vmatprep.subr.mxu0 0.0
  %283 = vmatpush1.msra.mxu0 0.0
  %284 = vmatprep.subr.mxu0 0.0
  %285 = vmatpush1.msra.mxu0 0.0
  %286 = vmatprep.subr.mxu0 0.0
  %287 = vmatpush1.msra.mxu0 0.0
  %288 = vmatprep.subr.mxu0 0.0
  %289 = vmatpush1.msra.mxu0 0.0
  %290 = vmatprep.subr.mxu0 0.0
  %291 = vmatpush1.msra.mxu0 0.0
  %292 = vmatprep.subr.mxu0 0.0
  %293 = vmatpush1.msra.mxu0 0.0
  %294 = vmatprep.subr.mxu0 0.0
  %295 = vmatpush1.msra.mxu0 0.0
  %296 = vmatprep.subr.mxu0 0.0
  %297 = vmatpush1.msra.mxu0 0.0
  %298 = vmatprep.subr.mxu0 0.0
  %299 = vmatpush1.msra.mxu0 0.0
  %300 = vmatprep.subr.mxu0 0.0
  %301 = vmatpush1.msra.mxu0 0.0
  %302 = vmatprep.subr.mxu0 0.0
  %303 = vmatpush1.msra.mxu0 0.0
  %304 = vmatprep.subr.mxu0 0.0
  %305 = vmatpush1.msra.mxu0 0.0
  %306 = vmatprep.subr.mxu0 0.0
  %307 = vmatpush1.msra.mxu0 0.0
  %308 = vmatprep.subr.mxu0 0.0
  %309 = vmatpush1.msra.mxu0 0.0
  %310 = vmatprep.subr.mxu0 0.0
  %311 = vmatpush1.msra.mxu0 0.0
  %312 = vmatprep.subr.mxu0 0.0
  %313 = vmatpush1.msra.mxu0 0.0
  %314 = vmatprep.subr.mxu0 0.0
  %315 = vmatpush1.msra.mxu0 0.0
  %316 = vmatprep.subr.mxu0 0.0
  %317 = vmatpush1.msra.mxu0 0.0
  %318 = vmatprep.subr.mxu0 0.0
  %319 = vmatpush1.msra.mxu0 0.0
  %320 = vmatprep.subr.mxu0 0.0
  %321 = vmatpush1.msra.mxu0 0.0
  %322 = vmatprep.subr.mxu0 0.0
  %323 = vmatpush1.msra.mxu0 0.0
  %324 = vmatprep.subr.mxu0 0.0
  %325 = vmatpush1.msra.mxu0 0.0
  %326 = vmatprep.subr.mxu0 0.0
  %327 = vmatpush1.msra.mxu0 0.0
  %328 = vmatprep.mubr.f32.mxu0 0.0
  %329 = vmatmul.mubr.f32.gmra.mrb[0].mxu0 %v253
  %v330 = vpop.f32.mrb[0].mxu0
  %v331 = vadd.f32 0.0, %v330
  %v332 = vpop.f32.mrb[0].mxu0
  %333 = vmatprep.mubr.f32.mxu0 0.0
  %334 = vmatmul.mubr.f32.gmra.mrb[0].mxu0 %v256
  %v335 = vpop.f32.mrb[0].mxu0
  %v336 = vadd.f32 0.0, %v335
  %v337 = vpop.f32.mrb[0].mxu0
  %338 = vmatprep.mubr.f32.mxu0 0.0
  %339 = vmatmul.mubr.f32.gmra.mrb[0].mxu0 %v259
  %v340 = vpop.f32.mrb[0].mxu0
  %v341 = vadd.f32 0.0, %v340
  %v342 = vpop.f32.mrb[0].mxu0
  %343 = vmatprep.mubr.f32.mxu0 0.0
  %344 = vmatmul.mubr.f32.gmra.mrb[0].mxu0 %v262
  %v345 = vpop.f32.mrb[0].mxu0
  %v346 = vadd.f32 0.0, %v345
  %v347 = vpop.f32.mrb[0].mxu0
  %348 = vdwg.mxu0
  %s349 = scalar_lea.vmem %s4, 16
  %v350 = vld [vmem:[%s349] sm:$0xff]
  %v351 = vld [vmem:[%s349 + $0x8] sm:$0xff]
  %v353 = vsel %vm251, %v144, 0
  %v356 = vsel %vm251, %v145, 0
  %v359 = vsel %vm251, %v146, 0
  %v362 = vsel %vm251, %v147, 0
  %364 = vmatprep.subr.mxu0 0.0
  %365 = vmatpush1.msra.mxu0 %v350
  %366 = vmatprep.subr.mxu0 0.0
  %367 = vmatpush1.msra.mxu0 %v351
  %368 = vmatprep.subr.mxu0 0.0
  %369 = vmatpush1.msra.mxu0 0.0
  %370 = vmatprep.subr.mxu0 0.0
  %371 = vmatpush1.msra.mxu0 0.0
  %372 = vmatprep.subr.mxu0 0.0
  %373 = vmatpush1.msra.mxu0 0.0
  %374 = vmatprep.subr.mxu0 0.0
  %375 = vmatpush1.msra.mxu0 0.0
  %376 = vmatprep.subr.mxu0 0.0
  %377 = vmatpush1.msra.mxu0 0.0
  %378 = vmatprep.subr.mxu0 0.0
  %379 = vmatpush1.msra.mxu0 0.0
  %380 = vmatprep.subr.mxu0 0.0
  %381 = vmatpush1.msra.mxu0 0.0
  %382 = vmatprep.subr.mxu0 0.0
  %383 = vmatpush1.msra.mxu0 0.0
  %384 = vmatprep.subr.mxu0 0.0
  %385 = vmatpush1.msra.mxu0 0.0
  %386 = vmatprep.subr.mxu0 0.0
  %387 = vmatpush1.msra.mxu0 0.0
  %388 = vmatprep.subr.mxu0 0.0
  %389 = vmatpush1.msra.mxu0 0.0
  %390 = vmatprep.subr.mxu0 0.0
  %391 = vmatpush1.msra.mxu0 0.0
  %392 = vmatprep.subr.mxu0 0.0
  %393 = vmatpush1.msra.mxu0 0.0
  %394 = vmatprep.subr.mxu0 0.0
  %395 = vmatpush1.msra.mxu0 0.0
  %396 = vmatprep.subr.mxu0 0.0
  %397 = vmatpush1.msra.mxu0 0.0
  %398 = vmatprep.subr.mxu0 0.0
  %399 = vmatpush1.msra.mxu0 0.0
  %400 = vmatprep.subr.mxu0 0.0
  %401 = vmatpush1.msra.mxu0 0.0
  %402 = vmatprep.subr.mxu0 0.0
  %403 = vmatpush1.msra.mxu0 0.0
  %404 = vmatprep.subr.mxu0 0.0
  %405 = vmatpush1.msra.mxu0 0.0
  %406 = vmatprep.subr.mxu0 0.0
  %407 = vmatpush1.msra.mxu0 0.0
  %408 = vmatprep.subr.mxu0 0.0
  %409 = vmatpush1.msra.mxu0 0.0
  %410 = vmatprep.subr.mxu0 0.0
  %411 = vmatpush1.msra.mxu0 0.0
  %412 = vmatprep.subr.mxu0 0.0
  %413 = vmatpush1.msra.mxu0 0.0
  %414 = vmatprep.subr.mxu0 0.0
  %415 = vmatpush1.msra.mxu0 0.0
  %416 = vmatprep.subr.mxu0 0.0
  %417 = vmatpush1.msra.mxu0 0.0
  %418 = vmatprep.subr.mxu0 0.0
  %419 = vmatpush1.msra.mxu0 0.0
  %420 = vmatprep.subr.mxu0 0.0
  %421 = vmatpush1.msra.mxu0 0.0
  %422 = vmatprep.subr.mxu0 0.0
  %423 = vmatpush1.msra.mxu0 0.0
  %424 = vmatprep.subr.mxu0 0.0
  %425 = vmatpush1.msra.mxu0 0.0
  %426 = vmatprep.subr.mxu0 0.0
  %427 = vmatpush1.msra.mxu0 0.0
  %428 = vmatprep.mubr.f32.mxu0 0.0
  %429 = vmatmul.mubr.f32.gmra.mrb[0].mxu0 %v353
  %v430 = vpop.f32.mrb[0].mxu0
  %v431 = vadd.f32 0.0, %v430
  %v432 = vpop.f32.mrb[0].mxu0
  %433 = vmatprep.mubr.f32.mxu0 0.0
  %434 = vmatmul.mubr.f32.gmra.mrb[0].mxu0 %v356
  %v435 = vpop.f32.mrb[0].mxu0
  %v436 = vadd.f32 0.0, %v435
  %v437 = vpop.f32.mrb[0].mxu0
  %438 = vmatprep.mubr.f32.mxu0 0.0
  %439 = vmatmul.mubr.f32.gmra.mrb[0].mxu0 %v359
  %v440 = vpop.f32.mrb[0].mxu0
  %v441 = vadd.f32 0.0, %v440
  %v442 = vpop.f32.mrb[0].mxu0
  %443 = vmatprep.mubr.f32.mxu0 0.0
  %444 = vmatmul.mubr.f32.gmra.mrb[0].mxu0 %v362
  %v445 = vpop.f32.mrb[0].mxu0
  %v446 = vadd.f32 0.0, %v445
  %v447 = vpop.f32.mrb[0].mxu0
  %448 = vdwg.mxu0
  %s449 = scalar_lea.vmem %s4, 32
  %v450 = vld [vmem:[%s449] sm:$0xff]
  %v451 = vld [vmem:[%s449 + $0x8] sm:$0xff]
  %452 = vmatprep.subr.mxu0 0.0
  %453 = vmatpush1.msra.mxu0 %v450
  %454 = vmatprep.subr.mxu0 0.0
  %455 = vmatpush1.msra.mxu0 %v451
  %456 = vmatprep.subr.mxu0 0.0
  %457 = vmatpush1.msra.mxu0 0.0
  %458 = vmatprep.subr.mxu0 0.0
  %459 = vmatpush1.msra.mxu0 0.0
  %460 = vmatprep.subr.mxu0 0.0
  %461 = vmatpush1.msra.mxu0 0.0
  %462 = vmatprep.subr.mxu0 0.0
  %463 = vmatpush1.msra.mxu0 0.0
  %464 = vmatprep.subr.mxu0 0.0
  %465 = vmatpush1.msra.mxu0 0.0
  %466 = vmatprep.subr.mxu0 0.0
  %467 = vmatpush1.msra.mxu0 0.0
  %468 = vmatprep.subr.mxu0 0.0
  %469 = vmatpush1.msra.mxu0 0.0
  %470 = vmatprep.subr.mxu0 0.0
  %471 = vmatpush1.msra.mxu0 0.0
  %472 = vmatprep.subr.mxu0 0.0
  %473 = vmatpush1.msra.mxu0 0.0
  %474 = vmatprep.subr.mxu0 0.0
  %475 = vmatpush1.msra.mxu0 0.0
  %476 = vmatprep.subr.mxu0 0.0
  %477 = vmatpush1.msra.mxu0 0.0
  %478 = vmatprep.subr.mxu0 0.0
  %479 = vmatpush1.msra.mxu0 0.0
  %480 = vmatprep.subr.mxu0 0.0
  %481 = vmatpush1.msra.mxu0 0.0
  %482 = vmatprep.subr.mxu0 0.0
  %483 = vmatpush1.msra.mxu0 0.0
  %484 = vmatprep.subr.mxu0 0.0
  %485 = vmatpush1.msra.mxu0 0.0
  %486 = vmatprep.subr.mxu0 0.0
  %487 = vmatpush1.msra.mxu0 0.0
  %488 = vmatprep.subr.mxu0 0.0
  %489 = vmatpush1.msra.mxu0 0.0
  %490 = vmatprep.subr.mxu0 0.0
  %491 = vmatpush1.msra.mxu0 0.0
  %492 = vmatprep.subr.mxu0 0.0
  %493 = vmatpush1.msra.mxu0 0.0
  %494 = vmatprep.subr.mxu0 0.0
  %495 = vmatpush1.msra.mxu0 0.0
  %496 = vmatprep.subr.mxu0 0.0
  %497 = vmatpush1.msra.mxu0 0.0
  %498 = vmatprep.subr.mxu0 0.0
  %499 = vmatpush1.msra.mxu0 0.0
  %500 = vmatprep.subr.mxu0 0.0
  %501 = vmatpush1.msra.mxu0 0.0
  %502 = vmatprep.subr.mxu0 0.0
  %503 = vmatpush1.msra.mxu0 0.0
  %504 = vmatprep.subr.mxu0 0.0
  %505 = vmatpush1.msra.mxu0 0.0
  %506 = vmatprep.subr.mxu0 0.0
  %507 = vmatpush1.msra.mxu0 0.0
  %508 = vmatprep.subr.mxu0 0.0
  %509 = vmatpush1.msra.mxu0 0.0
  %510 = vmatprep.subr.mxu0 0.0
  %511 = vmatpush1.msra.mxu0 0.0
  %512 = vmatprep.subr.mxu0 0.0
  %513 = vmatpush1.msra.mxu0 0.0
  %514 = vmatprep.subr.mxu0 0.0
  %515 = vmatpush1.msra.mxu0 0.0
  %516 = vmatprep.mubr.f32.mxu0 0.0
  %517 = vmatmul.mubr.f32.gmra.mrb[0].mxu0 %v253
  %v518 = vpop.f32.mrb[0].mxu0
  %v519 = vadd.f32 0.0, %v518
  %v520 = vpop.f32.mrb[0].mxu0
  %521 = vmatprep.mubr.f32.mxu0 0.0
  %522 = vmatmul.mubr.f32.gmra.mrb[0].mxu0 %v256
  %v523 = vpop.f32.mrb[0].mxu0
  %v524 = vadd.f32 0.0, %v523
  %v525 = vpop.f32.mrb[0].mxu0
  %526 = vmatprep.mubr.f32.mxu0 0.0
  %527 = vmatmul.mubr.f32.gmra.mrb[0].mxu0 %v259
  %v528 = vpop.f32.mrb[0].mxu0
  %v529 = vadd.f32 0.0, %v528
  %v530 = vpop.f32.mrb[0].mxu0
  %531 = vmatprep.mubr.f32.mxu0 0.0
  %532 = vmatmul.mubr.f32.gmra.mrb[0].mxu0 %v262
  %v533 = vpop.f32.mrb[0].mxu0
  %v534 = vadd.f32 0.0, %v533
  %v535 = vpop.f32.mrb[0].mxu0
  %536 = vdwg.mxu0
  %vm541 = vcmask 1040384
  %v542 = vrot.slane %v331, 7
  %v543 = vrot.slane %v336, 7
  %v544 = vsel %vm541, %v542, %v543
  %v545 = vrot.slane %v341, 7
  %v546 = vsel %vm541, %v543, %v545
  %v547 = vrot.slane %v346, 7
  %v548 = vsel %vm541, %v545, %v547
  %v553 = vsel %vm541, 0.0, %v542
  %v554 = vlaneseq
  %v555 = vshrl.u32 %v554, 7
  %v556 = vadd.s32 %v555, 8
  %v557 = vadd.s32 %v555, 16
  %v558 = vadd.s32 %v555, 24
  %vm559 = vcmp.lt.s32.totalorder %v555, 0
  %v560 = vsub.s32 0, %v555
  %v561 = vsel %vm559, %v560, %v555
  %v562 = vshrl.u32 %v561, 4
  %v563 = vand.u32 %v561, 15
  %v564 = vsub.s32 0, %v563
  %v565 = vsel %vm559, %v564, %v563
  %vm566 = vcmp.lt.s32.totalorder %v556, 0
  %v567 = vsub.s32 0, %v556
  %v568 = vsel %vm566, %v567, %v556
  %v569 = vshrl.u32 %v568, 4
  %v570 = vand.u32 %v568, 15
  %v571 = vsub.s32 0, %v570
  %v572 = vsel %vm566, %v571, %v570
  %vm573 = vcmp.lt.s32.totalorder %v557, 0
  %v574 = vsub.s32 0, %v557
  %v575 = vsel %vm573, %v574, %v557
  %v576 = vshrl.u32 %v575, 4
  %v577 = vand.u32 %v575, 15
  %v578 = vsub.s32 0, %v577
  %v579 = vsel %vm573, %v578, %v577
  %vm580 = vcmp.lt.s32.totalorder %v558, 0
  %v581 = vsub.s32 0, %v558
  %v582 = vsel %vm580, %v581, %v558
  %v583 = vshrl.u32 %v582, 4
  %v584 = vand.u32 %v582, 15
  %v585 = vsub.s32 0, %v584
  %v586 = vsel %vm580, %v585, %v584
  %vm587 = vcmp.ne.s32.totalorder %v565, 0
  %vm588 = vcmp.ne.s32.totalorder %v572, 0
  %vm589 = vcmp.ne.s32.totalorder %v579, 0
  %vm590 = vcmp.ne.s32.totalorder %v586, 0
  %vm591 = vcmp.lt.s32.totalorder %v565, 0
  %vm592 = vcmp.lt.s32.totalorder %v572, 0
  %vm593 = vcmp.lt.s32.totalorder %v579, 0
  %vm594 = vcmp.lt.s32.totalorder %v586, 0
  %vm595 = vmand %vm591, %vm587
  %vm596 = vmand %vm592, %vm588
  %vm597 = vmand %vm593, %vm589
  %vm598 = vmand %vm594, %vm590
  %v599 = vadd.s32 %v565, 16
  %v600 = vadd.s32 %v572, 16
  %v601 = vadd.s32 %v579, 16
  %v602 = vadd.s32 %v586, 16
  %v603 = vsel %vm595, %v599, %v565
  %v604 = vsel %vm596, %v600, %v572
  %v605 = vsel %vm597, %v601, %v579
  %v606 = vsel %vm598, %v602, %v586
  %vm607 = vcmp.eq.s32.totalorder %v603, 0
  %vm608 = vcmp.eq.s32.totalorder %v604, 0
  %vm609 = vcmp.eq.s32.totalorder %v605, 0
  %vm610 = vcmp.eq.s32.totalorder %v606, 0
  %v611 = vsel %vm607, 0.0, %v553
  %v612 = vsel %vm608, 0.0, %v544
  %v613 = vsel %vm609, 0.0, %v546
  %v614 = vsel %vm610, 0.0, %v548
  %v615 = vadd.f32 %v611, %v431
  %v616 = vadd.f32 %v612, %v436
  %v617 = vadd.f32 %v613, %v441
  %v618 = vadd.f32 %v614, %v446
  %v619 = vadd.f32 %v615, %v519
  %v620 = vadd.f32 %v616, %v524
  %v621 = vadd.f32 %v617, %v529
  %v622 = vadd.f32 %v618, %v534
  %v623 = vld [vmem:[%s5] sm:$0x1]
  %v625 = vlaneseq
  %v626 = vshrl.u32 %v625, 7
  %v627 = vsub.s32 0, %v626
  %v628 = vrot.slane %v623, %v627
  %v630 = vadd.f32 %v619, %v628
  %v631 = vadd.f32 %v620, %v628
  %v632 = vadd.f32 %v621, %v628
  %v633 = vadd.f32 %v622, %v628
  %v634 = vmax.f32 %v630, 0.0
  %v635 = vmax.f32 %v631, 0.0
  %v636 = vmax.f32 %v632, 0.0
  %v637 = vmax.f32 %v633, 0.0
  %v638 = vld [vmem:[%s6] sm:$0xff]
  %v639 = vld [vmem:[%s6 + $0x8] sm:$0xff]
  %v640 = vld [vmem:[%s6 + $0x10] sm:$0xff]
  %v641 = vld [vmem:[%s6 + $0x18] sm:$0xff]
  %v642 = vadd.f32 %v634, %v638
  %v643 = vadd.f32 %v635, %v639
  %v644 = vadd.f32 %v636, %v640
  %v645 = vadd.f32 %v637, %v641
  %vm646 = vcmask 261120
  %647 = vst.msk [vmem:[%s7] sm:$0xff] %vm646, %v642
  %648 = vst.msk [vmem:[%s7 + $0x8] sm:$0xff] %vm646, %v643
  %649 = vst.msk [vmem:[%s7 + $0x10] sm:$0xff] %vm646, %v644
  %650 = vst.msk [vmem:[%s7 + $0x18] sm:$0xff] %vm646, %v645
  // Predicated region
  $region30: #{sacall_forward.2} parent=0 // pred_check
    _
  $region31: #{sacall_forward.2} parent=0 // pred_check_branch
    %652 = sbr.rel (0) target = $region33
  $region32: #{sacall_forward.2} parent=0 // pred_region
    _
  $region33: #{sacall_forward.2} parent=0 // pred_fallthru
    _
  // Predicated region
  $region34: #{sacall_forward.2} parent=0 // pred_check
    _
  $region35: #{sacall_forward.2} parent=0 // pred_check_branch
    %654 = sbr.rel (0) target = $region37
  $region36: #{sacall_forward.2} parent=0 // pred_region
    _
  $region37: #{sacall_forward.2} parent=0 // pred_fallthru
    _

// kernel: sacall_forward.3
$region0: #{sacall_forward.3}
  #allocation0 [shape = 'u32[]', space=smem, size = 0x4, offset = 0x4, fixed_abs, tag = 'smem constant byte address 0x4 - core index']
  #allocation1 [shape = 'u32[144,128]{1,0:T(1,128)}', space=vmem, size = 0x12000, scoped, tag = 'internal scratch']
  #allocation2 [shape = 'f32[16,32]{1,0:T(8,128)}', space=vmem, size = 0x2000, scoped, tag = 'scratch operand']
  %s0 = inlined_call_operand.vmem [shape: f32[2,16,32], index: 0, kind: input, shape index: {}]
  %s1 = inlined_call_operand.vmem [shape: bf16[2,32,96], index: 1, kind: input, shape index: {}]
  %s2 = inlined_call_operand.vmem [shape: f32[2,1,96], index: 2, kind: input, shape index: {}]
  %s3 = inlined_call_operand.vmem [shape: bf16[2,32,32], index: 3, kind: input, shape index: {}]
  %s4 = inlined_call_operand.vmem [shape: f32[2,1,32], index: 4, kind: input, shape index: {}]
  %s5 = inlined_call_operand.vmem [shape: f32[2,1,32], index: 5, kind: input, shape index: {}]
  %s6 = inlined_call_operand.vmem [shape: f32[2,1,32], index: 6, kind: input, shape index: {}]
  %s7 = inlined_call_operand.vmem [shape: bf16[2,32,64], index: 7, kind: input, shape index: {}]
  %s8 = inlined_call_operand.vmem [shape: f32[2,1,64], index: 8, kind: input, shape index: {}]
  %s9 = inlined_call_operand.vmem [shape: bf16[2,64,32], index: 9, kind: input, shape index: {}]
  %s10 = inlined_call_operand.vmem [shape: f32[2,1,32], index: 10, kind: input, shape index: {}]
  %s11 = inlined_call_operand.vmem [shape: f32[2,1,32], index: 11, kind: input, shape index: {}]
  %s12 = inlined_call_operand.vmem [shape: f32[2,1,32], index: 12, kind: input, shape index: {}]
  %s13 = inlined_call_operand.vmem [shape: bf16[32,5], index: 13, kind: input, shape index: {}]
  %s14 = inlined_call_operand.vmem [shape: f32[1,5], index: 14, kind: input, shape index: {}]
  %s15 = inlined_call_operand.vmem [shape: f32[2,16,5], index: 15, kind: output, shape index: {}]
  %s16 = sld [smem:[#allocation0]]
  $region101: #{sacall_forward.3} parent=0
    _
  %s18 = ssub.s32 1, %s16
  %s19 = scalar_select 0, %s18, %s16
  loop: start=0, step=1, limit=6
  $region2: #{sacall_forward.3} parent=0 // loop_pre_header
    _
  $region3: #{sacall_forward.3} parent=0 // loop_header
    %s21 = sphi 0, %s25
    %p22 = scmp.ge.s32.totalorder %s21, 6
    %s28 = sphi 0, %s40
    %s29 = sphi 0, %s36
    %s30 = sphi 0, %s28
    %s31 = sphi 0, %s29
    %s32 = sphi 0, %s30
    %s33 = sphi 0, %s31
    %s43 = sphi 0, %s45
    %s46 = sphi 0, %s43
    %s47 = sphi 0, %s46
    %s63 = sphi 0, %s47
    %s69 = sphi 0, %s71
    %s72 = sphi 0, %s69
    %s73 = sphi 0, %s72
    %s89 = sphi 0, %s73
    %s95 = sphi 0, %s97
    %s98 = sphi 0, %s95
    %s99 = sphi 0, %s98
    %s115 = sphi 0, %s99
    %s121 = sphi 0, %s123
    %s124 = sphi 0, %s121
    %s125 = sphi 0, %s124
    %s141 = sphi 0, %s125
    %s147 = sphi 0, %s149
    %s150 = sphi 0, %s147
    %s151 = sphi 0, %s150
    %s167 = sphi 0, %s151
    %s173 = sphi 0, %s175
    %s176 = sphi 0, %s173
    %s177 = sphi 0, %s176
    %s193 = sphi 0, %s177
    %s199 = sphi 0, %s201
    %s202 = sphi 0, %s199
    %s203 = sphi 0, %s202
    %s219 = sphi 0, %s203
    %s225 = sphi 0, %s227
    %s228 = sphi 0, %s225
    %s229 = sphi 0, %s228
    %s245 = sphi 0, %s229
    %s251 = sphi 0, %s253
    %s254 = sphi 0, %s251
    %s255 = sphi 0, %s254
    %s271 = sphi 0, %s255
    %s277 = sphi 0, %s279
    %s280 = sphi 0, %s277
    %s281 = sphi 0, %s280
    %s297 = sphi 0, %s281
    %s303 = sphi 0, %s305
    %s306 = sphi 0, %s303
    %s307 = sphi 0, %s306
    %s323 = sphi 0, %s307
    %s329 = sphi 0, %s331
    %s332 = sphi 0, %s329
    %s333 = sphi 0, %s332
    %s349 = sphi 0, %s333
    %s355 = sphi 0, %s357
    %s358 = sphi 0, %s355
    %s359 = sphi 0, %s358
    %s375 = sphi 0, %s359
    %s379 = sphi 0, %s379
    %s381 = sphi 0, %s379
    %s382 = sphi 0, %s381
    %s396 = sphi 0, %s382
    %s400 = sphi 0, %s400
    %s402 = sphi 0, %s400
    %s403 = sphi 0, %s402
    %s417 = sphi 0, %s403
    %s423 = sphi 0, %s425
    %s426 = sphi 0, %s423
    %s427 = sphi 0, %s426
    %s443 = sphi 0, %s427
  $region4: #{sacall_forward.3} parent=0 // loop_header_branch
    %24 = sbr.rel (%p22) target = $region8
  $region5: #{sacall_forward.3} parent=0 // loop_body
    %s26 = ssub.s32 %s21, 1
    %s27 = ssub.s32 %s21, 2
    %s34 = sadd.s32 1, %s29
    %p35 = scmp.ge.s32.totalorder %s34, 2
    %s36 = scalar_select %p35, 0, %s34
    %s37 = sadd.s32 1, %s28
    %s38 = scalar_select %p35, %s37, %s28
    %p39 = scmp.ge.s32.totalorder %s38, 2
    %s40 = scalar_select %p39, 0, %s38
    %s41 = ssub.s32 %s28, %s40
    %p42 = scmp.eq.s32.totalorder %s41, 0
    %s44 = sadd.s32 %s43, 1
    %s45 = scalar_select %p42, %s43, %s44
    %p48 = pneg %p42
    %p49 = scmp.eq.s32.totalorder %s21, 3
    %p50 = por %p48, %p49
    %p51 = scmp.ne.s32.totalorder %s43, %s46
    %p52 = scmp.eq.s32.totalorder %s21, 0
    %p53 = por %p51, %p52
    %p54 = scmp.ne.s32.totalorder %s43, %s46
    %p55 = scmp.eq.s32.totalorder %s26, 3
    %p56 = por %p54, %p55
    %p57 = scmp.ne.s32.totalorder %s46, %s47
    %p58 = scmp.eq.s32.totalorder %s26, 0
    %p59 = por %p57, %p58
    %p60 = scmp.ne.s32.totalorder %s46, %s47
    %p61 = scmp.eq.s32.totalorder %s27, 3
    %p62 = por %p60, %p61
    %p64 = scmp.ne.s32.totalorder %s47, %s63
    %p65 = scmp.eq.s32.totalorder %s27, 0
    %p66 = por %p64, %p65
    %s67 = ssub.s32 %s29, %s36
    %p68 = scmp.eq.s32.totalorder %s67, 0
    %s70 = sadd.s32 %s69, 1
    %s71 = scalar_select %p68, %s69, %s70
    %p74 = pneg %p68
    %p75 = scmp.eq.s32.totalorder %s21, 3
    %p76 = por %p74, %p75
    %p77 = scmp.ne.s32.totalorder %s69, %s72
    %p78 = scmp.eq.s32.totalorder %s21, 0
    %p79 = por %p77, %p78
    %p80 = scmp.ne.s32.totalorder %s69, %s72
    %p81 = scmp.eq.s32.totalorder %s26, 3
    %p82 = por %p80, %p81
    %p83 = scmp.ne.s32.totalorder %s72, %s73
    %p84 = scmp.eq.s32.totalorder %s26, 0
    %p85 = por %p83, %p84
    %p86 = scmp.ne.s32.totalorder %s72, %s73
    %p87 = scmp.eq.s32.totalorder %s27, 3
    %p88 = por %p86, %p87
    %p90 = scmp.ne.s32.totalorder %s73, %s89
    %p91 = scmp.eq.s32.totalorder %s27, 0
    %p92 = por %p90, %p91
    %s93 = ssub.s32 %s29, %s36
    %p94 = scmp.eq.s32.totalorder %s93, 0
    %s96 = sadd.s32 %s95, 1
    %s97 = scalar_select %p94, %s95, %s96
    %p100 = pneg %p94
    %p101 = scmp.eq.s32.totalorder %s21, 3
    %p102 = por %p100, %p101
    %p103 = scmp.ne.s32.totalorder %s95, %s98
    %p104 = scmp.eq.s32.totalorder %s21, 0
    %p105 = por %p103, %p104
    %p106 = scmp.ne.s32.totalorder %s95, %s98
    %p107 = scmp.eq.s32.totalorder %s26, 3
    %p108 = por %p106, %p107
    %p109 = scmp.ne.s32.totalorder %s98, %s99
    %p110 = scmp.eq.s32.totalorder %s26, 0
    %p111 = por %p109, %p110
    %p112 = scmp.ne.s32.totalorder %s98, %s99
    %p113 = scmp.eq.s32.totalorder %s27, 3
    %p114 = por %p112, %p113
    %p116 = scmp.ne.s32.totalorder %s99, %s115
    %p117 = scmp.eq.s32.totalorder %s27, 0
    %p118 = por %p116, %p117
    %s119 = ssub.s32 %s29, %s36
    %p120 = scmp.eq.s32.totalorder %s119, 0
    %s122 = sadd.s32 %s121, 1
    %s123 = scalar_select %p120, %s121, %s122
    %p126 = pneg %p120
    %p127 = scmp.eq.s32.totalorder %s21, 3
    %p128 = por %p126, %p127
    %p129 = scmp.ne.s32.totalorder %s121, %s124
    %p130 = scmp.eq.s32.totalorder %s21, 0
    %p131 = por %p129, %p130
    %p132 = scmp.ne.s32.totalorder %s121, %s124
    %p133 = scmp.eq.s32.totalorder %s26, 3
    %p134 = por %p132, %p133
    %p135 = scmp.ne.s32.totalorder %s124, %s125
    %p136 = scmp.eq.s32.totalorder %s26, 0
    %p137 = por %p135, %p136
    %p138 = scmp.ne.s32.totalorder %s124, %s125
    %p139 = scmp.eq.s32.totalorder %s27, 3
    %p140 = por %p138, %p139
    %p142 = scmp.ne.s32.totalorder %s125, %s141
    %p143 = scmp.eq.s32.totalorder %s27, 0
    %p144 = por %p142, %p143
    %s145 = ssub.s32 %s29, %s36
    %p146 = scmp.eq.s32.totalorder %s145, 0
    %s148 = sadd.s32 %s147, 1
    %s149 = scalar_select %p146, %s147, %s148
    %p152 = pneg %p146
    %p153 = scmp.eq.s32.totalorder %s21, 3
    %p154 = por %p152, %p153
    %p155 = scmp.ne.s32.totalorder %s147, %s150
    %p156 = scmp.eq.s32.totalorder %s21, 0
    %p157 = por %p155, %p156
    %p158 = scmp.ne.s32.totalorder %s147, %s150
    %p159 = scmp.eq.s32.totalorder %s26, 3
    %p160 = por %p158, %p159
    %p161 = scmp.ne.s32.totalorder %s150, %s151
    %p162 = scmp.eq.s32.totalorder %s26, 0
    %p163 = por %p161, %p162
    %p164 = scmp.ne.s32.totalorder %s150, %s151
    %p165 = scmp.eq.s32.totalorder %s27, 3
    %p166 = por %p164, %p165
    %p168 = scmp.ne.s32.totalorder %s151, %s167
    %p169 = scmp.eq.s32.totalorder %s27, 0
    %p170 = por %p168, %p169
    %s171 = ssub.s32 %s29, %s36
    %p172 = scmp.eq.s32.totalorder %s171, 0
    %s174 = sadd.s32 %s173, 1
    %s175 = scalar_select %p172, %s173, %s174
    %p178 = pneg %p172
    %p179 = scmp.eq.s32.totalorder %s21, 3
    %p180 = por %p178, %p179
    %p181 = scmp.ne.s32.totalorder %s173, %s176
    %p182 = scmp.eq.s32.totalorder %s21, 0
    %p183 = por %p181, %p182
    %p184 = scmp.ne.s32.totalorder %s173, %s176
    %p185 = scmp.eq.s32.totalorder %s26, 3
    %p186 = por %p184, %p185
    %p187 = scmp.ne.s32.totalorder %s176, %s177
    %p188 = scmp.eq.s32.totalorder %s26, 0
    %p189 = por %p187, %p188
    %p190 = scmp.ne.s32.totalorder %s176, %s177
    %p191 = scmp.eq.s32.totalorder %s27, 3
    %p192 = por %p190, %p191
    %p194 = scmp.ne.s32.totalorder %s177, %s193
    %p195 = scmp.eq.s32.totalorder %s27, 0
    %p196 = por %p194, %p195
    %s197 = ssub.s32 %s29, %s36
    %p198 = scmp.eq.s32.totalorder %s197, 0
    %s200 = sadd.s32 %s199, 1
    %s201 = scalar_select %p198, %s199, %s200
    %p204 = pneg %p198
    %p205 = scmp.eq.s32.totalorder %s21, 3
    %p206 = por %p204, %p205
    %p207 = scmp.ne.s32.totalorder %s199, %s202
    %p208 = scmp.eq.s32.totalorder %s21, 0
    %p209 = por %p207, %p208
    %p210 = scmp.ne.s32.totalorder %s199, %s202
    %p211 = scmp.eq.s32.totalorder %s26, 3
    %p212 = por %p210, %p211
    %p213 = scmp.ne.s32.totalorder %s202, %s203
    %p214 = scmp.eq.s32.totalorder %s26, 0
    %p215 = por %p213, %p214
    %p216 = scmp.ne.s32.totalorder %s202, %s203
    %p217 = scmp.eq.s32.totalorder %s27, 3
    %p218 = por %p216, %p217
    %p220 = scmp.ne.s32.totalorder %s203, %s219
    %p221 = scmp.eq.s32.totalorder %s27, 0
    %p222 = por %p220, %p221
    %s223 = ssub.s32 %s29, %s36
    %p224 = scmp.eq.s32.totalorder %s223, 0
    %s226 = sadd.s32 %s225, 1
    %s227 = scalar_select %p224, %s225, %s226
    %p230 = pneg %p224
    %p231 = scmp.eq.s32.totalorder %s21, 3
    %p232 = por %p230, %p231
    %p233 = scmp.ne.s32.totalorder %s225, %s228
    %p234 = scmp.eq.s32.totalorder %s21, 0
    %p235 = por %p233, %p234
    %p236 = scmp.ne.s32.totalorder %s225, %s228
    %p237 = scmp.eq.s32.totalorder %s26, 3
    %p238 = por %p236, %p237
    %p239 = scmp.ne.s32.totalorder %s228, %s229
    %p240 = scmp.eq.s32.totalorder %s26, 0
    %p241 = por %p239, %p240
    %p242 = scmp.ne.s32.totalorder %s228, %s229
    %p243 = scmp.eq.s32.totalorder %s27, 3
    %p244 = por %p242, %p243
    %p246 = scmp.ne.s32.totalorder %s229, %s245
    %p247 = scmp.eq.s32.totalorder %s27, 0
    %p248 = por %p246, %p247
    %s249 = ssub.s32 %s29, %s36
    %p250 = scmp.eq.s32.totalorder %s249, 0
    %s252 = sadd.s32 %s251, 1
    %s253 = scalar_select %p250, %s251, %s252
    %p256 = pneg %p250
    %p257 = scmp.eq.s32.totalorder %s21, 3
    %p258 = por %p256, %p257
    %p259 = scmp.ne.s32.totalorder %s251, %s254
    %p260 = scmp.eq.s32.totalorder %s21, 0
    %p261 = por %p259, %p260
    %p262 = scmp.ne.s32.totalorder %s251, %s254
    %p263 = scmp.eq.s32.totalorder %s26, 3
    %p264 = por %p262, %p263
    %p265 = scmp.ne.s32.totalorder %s254, %s255
    %p266 = scmp.eq.s32.totalorder %s26, 0
    %p267 = por %p265, %p266
    %p268 = scmp.ne.s32.totalorder %s254, %s255
    %p269 = scmp.eq.s32.totalorder %s27, 3
    %p270 = por %p268, %p269
    %p272 = scmp.ne.s32.totalorder %s255, %s271
    %p273 = scmp.eq.s32.totalorder %s27, 0
    %p274 = por %p272, %p273
    %s275 = ssub.s32 %s29, %s36
    %p276 = scmp.eq.s32.totalorder %s275, 0
    %s278 = sadd.s32 %s277, 1
    %s279 = scalar_select %p276, %s277, %s278
    %p282 = pneg %p276
    %p283 = scmp.eq.s32.totalorder %s21, 3
    %p284 = por %p282, %p283
    %p285 = scmp.ne.s32.totalorder %s277, %s280
    %p286 = scmp.eq.s32.totalorder %s21, 0
    %p287 = por %p285, %p286
    %p288 = scmp.ne.s32.totalorder %s277, %s280
    %p289 = scmp.eq.s32.totalorder %s26, 3
    %p290 = por %p288, %p289
    %p291 = scmp.ne.s32.totalorder %s280, %s281
    %p292 = scmp.eq.s32.totalorder %s26, 0
    %p293 = por %p291, %p292
    %p294 = scmp.ne.s32.totalorder %s280, %s281
    %p295 = scmp.eq.s32.totalorder %s27, 3
    %p296 = por %p294, %p295
    %p298 = scmp.ne.s32.totalorder %s281, %s297
    %p299 = scmp.eq.s32.totalorder %s27, 0
    %p300 = por %p298, %p299
    %s301 = ssub.s32 %s29, %s36
    %p302 = scmp.eq.s32.totalorder %s301, 0
    %s304 = sadd.s32 %s303, 1
    %s305 = scalar_select %p302, %s303, %s304
    %p308 = pneg %p302
    %p309 = scmp.eq.s32.totalorder %s21, 3
    %p310 = por %p308, %p309
    %p311 = scmp.ne.s32.totalorder %s303, %s306
    %p312 = scmp.eq.s32.totalorder %s21, 0
    %p313 = por %p311, %p312
    %p314 = scmp.ne.s32.totalorder %s303, %s306
    %p315 = scmp.eq.s32.totalorder %s26, 3
    %p316 = por %p314, %p315
    %p317 = scmp.ne.s32.totalorder %s306, %s307
    %p318 = scmp.eq.s32.totalorder %s26, 0
    %p319 = por %p317, %p318
    %p320 = scmp.ne.s32.totalorder %s306, %s307
    %p321 = scmp.eq.s32.totalorder %s27, 3
    %p322 = por %p320, %p321
    %p324 = scmp.ne.s32.totalorder %s307, %s323
    %p325 = scmp.eq.s32.totalorder %s27, 0
    %p326 = por %p324, %p325
    %s327 = ssub.s32 %s29, %s36
    %p328 = scmp.eq.s32.totalorder %s327, 0
    %s330 = sadd.s32 %s329, 1
    %s331 = scalar_select %p328, %s329, %s330
    %p334 = pneg %p328
    %p335 = scmp.eq.s32.totalorder %s21, 3
    %p336 = por %p334, %p335
    %p337 = scmp.ne.s32.totalorder %s329, %s332
    %p338 = scmp.eq.s32.totalorder %s21, 0
    %p339 = por %p337, %p338
    %p340 = scmp.ne.s32.totalorder %s329, %s332
    %p341 = scmp.eq.s32.totalorder %s26, 3
    %p342 = por %p340, %p341
    %p343 = scmp.ne.s32.totalorder %s332, %s333
    %p344 = scmp.eq.s32.totalorder %s26, 0
    %p345 = por %p343, %p344
    %p346 = scmp.ne.s32.totalorder %s332, %s333
    %p347 = scmp.eq.s32.totalorder %s27, 3
    %p348 = por %p346, %p347
    %p350 = scmp.ne.s32.totalorder %s333, %s349
    %p351 = scmp.eq.s32.totalorder %s27, 0
    %p352 = por %p350, %p351
    %s353 = ssub.s32 %s29, %s36
    %p354 = scmp.eq.s32.totalorder %s353, 0
    %s356 = sadd.s32 %s355, 1
    %s357 = scalar_select %p354, %s355, %s356
    %p360 = pneg %p354
    %p361 = scmp.eq.s32.totalorder %s21, 3
    %p362 = por %p360, %p361
    %p363 = scmp.ne.s32.totalorder %s355, %s358
    %p364 = scmp.eq.s32.totalorder %s21, 0
    %p365 = por %p363, %p364
    %p366 = scmp.ne.s32.totalorder %s355, %s358
    %p367 = scmp.eq.s32.totalorder %s26, 3
    %p368 = por %p366, %p367
    %p369 = scmp.ne.s32.totalorder %s358, %s359
    %p370 = scmp.eq.s32.totalorder %s26, 0
    %p371 = por %p369, %p370
    %p372 = scmp.ne.s32.totalorder %s358, %s359
    %p373 = scmp.eq.s32.totalorder %s27, 3
    %p374 = por %p372, %p373
    %p376 = scmp.ne.s32.totalorder %s359, %s375
    %p377 = scmp.eq.s32.totalorder %s27, 0
    %p378 = por %p376, %p377
    %s380 = sadd.s32 %s379, 1
    %p383 = scmp.eq.s32.totalorder %s21, 3
    %p384 = scmp.ne.s32.totalorder %s379, %s381
    %p385 = scmp.eq.s32.totalorder %s21, 0
    %p386 = por %p384, %p385
    %p387 = scmp.ne.s32.totalorder %s379, %s381
    %p388 = scmp.eq.s32.totalorder %s26, 3
    %p389 = por %p387, %p388
    %p390 = scmp.ne.s32.totalorder %s381, %s382
    %p391 = scmp.eq.s32.totalorder %s26, 0
    %p392 = por %p390, %p391
    %p393 = scmp.ne.s32.totalorder %s381, %s382
    %p394 = scmp.eq.s32.totalorder %s27, 3
    %p395 = por %p393, %p394
    %p397 = scmp.ne.s32.totalorder %s382, %s396
    %p398 = scmp.eq.s32.totalorder %s27, 0
    %p399 = por %p397, %p398
    %s401 = sadd.s32 %s400, 1
    %p404 = scmp.eq.s32.totalorder %s21, 3
    %p405 = scmp.ne.s32.totalorder %s400, %s402
    %p406 = scmp.eq.s32.totalorder %s21, 0
    %p407 = por %p405, %p406
    %p408 = scmp.ne.s32.totalorder %s400, %s402
    %p409 = scmp.eq.s32.totalorder %s26, 3
    %p410 = por %p408, %p409
    %p411 = scmp.ne.s32.totalorder %s402, %s403
    %p412 = scmp.eq.s32.totalorder %s26, 0
    %p413 = por %p411, %p412
    %p414 = scmp.ne.s32.totalorder %s402, %s403
    %p415 = scmp.eq.s32.totalorder %s27, 3
    %p416 = por %p414, %p415
    %p418 = scmp.ne.s32.totalorder %s403, %s417
    %p419 = scmp.eq.s32.totalorder %s27, 0
    %p420 = por %p418, %p419
    %s421 = ssub.s32 %s28, %s40
    %p422 = scmp.eq.s32.totalorder %s421, 0
    %s424 = sadd.s32 %s423, 1
    %s425 = scalar_select %p422, %s423, %s424
    %p428 = pneg %p422
    %p429 = scmp.eq.s32.totalorder %s21, 3
    %p430 = por %p428, %p429
    %p431 = scmp.ne.s32.totalorder %s423, %s426
    %p432 = scmp.eq.s32.totalorder %s21, 0
    %p433 = por %p431, %p432
    %p434 = scmp.ne.s32.totalorder %s423, %s426
    %p435 = scmp.eq.s32.totalorder %s26, 3
    %p436 = por %p434, %p435
    %p437 = scmp.ne.s32.totalorder %s426, %s427
    %p438 = scmp.eq.s32.totalorder %s26, 0
    %p439 = por %p437, %p438
    %p440 = scmp.ne.s32.totalorder %s426, %s427
    %p441 = scmp.eq.s32.totalorder %s27, 3
    %p442 = por %p440, %p441
    %p444 = scmp.ne.s32.totalorder %s427, %s443
    %p445 = scmp.eq.s32.totalorder %s27, 0
    %p446 = por %p444, %p445
    %p447 = scmp.le.s32.totalorder 1, %s21
    %p448 = scmp.lt.s32.totalorder %s21, 5
    %p449 = pnand %p447, %p448
    %p450 = pneg %p449
    // Predicated region
    $region9: #{sacall_forward.3} parent=5 // pred_check
      _
    $region10: #{sacall_forward.3} parent=5 // pred_check_branch
      %452 = sbr.rel (%p449) target = $region12
    $region11: #{sacall_forward.3} parent=5 // pred_region
      %s453 = ssub.s32 %s21, 1
      // Predicated region
      $region13: #{sacall_forward.3} parent=11 // pred_check
        %p454 = pneg %p392
      $region14: #{sacall_forward.3} parent=11 // pred_check_branch
        %456 = sbr.rel (%p454) target = $region16
      $region15: #{sacall_forward.3} parent=11 // pred_region
        _
      $region16: #{sacall_forward.3} parent=11 // pred_fallthru
        _
      // Predicated region
      $region17: #{sacall_forward.3} parent=11 // pred_check
        %p457 = pneg %p413
      $region18: #{sacall_forward.3} parent=11 // pred_check_branch
        %459 = sbr.rel (%p457) target = $region20
      $region19: #{sacall_forward.3} parent=11 // pred_region
        _
      $region20: #{sacall_forward.3} parent=11 // pred_fallthru
        _
    $region12: #{sacall_forward.3} parent=5 // pred_fallthru
      _
    %p460 = scmp.lt.s32.totalorder %s21, 4
    // Predicated region
    $region21: #{sacall_forward.3} parent=5 // pred_check
      %p461 = pneg %p460
    $region22: #{sacall_forward.3} parent=5 // pred_check_branch
      %463 = sbr.rel (%p461) target = $region24
    $region23: #{sacall_forward.3} parent=5 // pred_region
      // Predicated region
      $region25: #{sacall_forward.3} parent=23 // pred_check
        %p464 = pneg %p53
      $region26: #{sacall_forward.3} parent=23 // pred_check_branch
        %466 = sbr.rel (%p464) target = $region28
      $region27: #{sacall_forward.3} parent=23 // pred_region
        %p467 = scmp.lt.s32.totalorder %s28, 1
        %s468 = scalar_select %p467, %s28, 1
        %s469 = smul.addr %s468, 2
        %s470 = smul.addr %s469, 8
        %s471 = scalar_lea.vmem %s0, %s470
      $region28: #{sacall_forward.3} parent=23 // pred_fallthru
        _
      // Predicated region
      $region29: #{sacall_forward.3} parent=23 // pred_check
        %p472 = pneg %p79
      $region30: #{sacall_forward.3} parent=23 // pred_check_branch
        %474 = sbr.rel (%p472) target = $region32
      $region31: #{sacall_forward.3} parent=23 // pred_region
        %p475 = scmp.lt.s32.totalorder %s29, 1
        %s476 = scalar_select %p475, %s29, 1
        %s477 = smul.addr %s476, 4
        %s478 = smul.addr %s477, 4
        %s479 = scalar_lea.vmem %s1, %s478
      $region32: #{sacall_forward.3} parent=23 // pred_fallthru
        _
      // Predicated region
      $region33: #{sacall_forward.3} parent=23 // pred_check
        %p480 = pneg %p105
      $region34: #{sacall_forward.3} parent=23 // pred_check_branch
        %482 = sbr.rel (%p480) target = $region36
      $region35: #{sacall_forward.3} parent=23 // pred_region
        %p483 = scmp.lt.s32.totalorder %s29, 1
        %s484 = scalar_select %p483, %s29, 1
        %s485 = scalar_lea.vmem %s2, %s484
      $region36: #{sacall_forward.3} parent=23 // pred_fallthru
        _
      // Predicated region
      $region37: #{sacall_forward.3} parent=23 // pred_check
        %p486 = pneg %p131
      $region38: #{sacall_forward.3} parent=23 // pred_check_branch
        %488 = sbr.rel (%p486) target = $region40
      $region39: #{sacall_forward.3} parent=23 // pred_region
        %p489 = scmp.lt.s32.totalorder %s29, 1
        %s490 = scalar_select %p489, %s29, 1
        %s491 = smul.addr %s490, 4
        %s492 = smul.addr %s491, 4
        %s493 = scalar_lea.vmem %s3, %s492
      $region40: #{sacall_forward.3} parent=23 // pred_fallthru
        _
      // Predicated region
      $region41: #{sacall_forward.3} parent=23 // pred_check
        %p494 = pneg %p157
      $region42: #{sacall_forward.3} parent=23 // pred_check_branch
        %496 = sbr.rel (%p494) target = $region44
      $region43: #{sacall_forward.3} parent=23 // pred_region
        %p497 = scmp.lt.s32.totalorder %s29, 1
        %s498 = scalar_select %p497, %s29, 1
        %s499 = scalar_lea.vmem %s4, %s498
      $region44: #{sacall_forward.3} parent=23 // pred_fallthru
        _
      // Predicated region
      $region45: #{sacall_forward.3} parent=23 // pred_check
        %p500 = pneg %p183
      $region46: #{sacall_forward.3} parent=23 // pred_check_branch
        %502 = sbr.rel (%p500) target = $region48
      $region47: #{sacall_forward.3} parent=23 // pred_region
        %p503 = scmp.lt.s32.totalorder %s29, 1
        %s504 = scalar_select %p503, %s29, 1
        %s505 = scalar_lea.vmem %s5, %s504
      $region48: #{sacall_forward.3} parent=23 // pred_fallthru
        _
      // Predicated region
      $region49: #{sacall_forward.3} parent=23 // pred_check
        %p506 = pneg %p209
      $region50: #{sacall_forward.3} parent=23 // pred_check_branch
        %508 = sbr.rel (%p506) target = $region52
      $region51: #{sacall_forward.3} parent=23 // pred_region
        %p509 = scmp.lt.s32.totalorder %s29, 1
        %s510 = scalar_select %p509, %s29, 1
        %s511 = scalar_lea.vmem %s6, %s510
      $region52: #{sacall_forward.3} parent=23 // pred_fallthru
        _
      // Predicated region
      $region53: #{sacall_forward.3} parent=23 // pred_check
        %p512 = pneg %p235
      $region54: #{sacall_forward.3} parent=23 // pred_check_branch
        %514 = sbr.rel (%p512) target = $region56
      $region55: #{sacall_forward.3} parent=23 // pred_region
        %p515 = scmp.lt.s32.totalorder %s29, 1
        %s516 = scalar_select %p515, %s29, 1
        %s517 = smul.addr %s516, 4
        %s518 = smul.addr %s517, 4
        %s519 = scalar_lea.vmem %s7, %s518
      $region56: #{sacall_forward.3} parent=23 // pred_fallthru
        _
      // Predicated region
      $region57: #{sacall_forward.3} parent=23 // pred_check
        %p520 = pneg %p261
      $region58: #{sacall_forward.3} parent=23 // pred_check_branch
        %522 = sbr.rel (%p520) target = $region60
      $region59: #{sacall_forward.3} parent=23 // pred_region
        %p523 = scmp.lt.s32.totalorder %s29, 1
        %s524 = scalar_select %p523, %s29, 1
        %s525 = scalar_lea.vmem %s8, %s524
      $region60: #{sacall_forward.3} parent=23 // pred_fallthru
        _
      // Predicated region
      $region61: #{sacall_forward.3} parent=23 // pred_check
        %p526 = pneg %p287
      $region62: #{sacall_forward.3} parent=23 // pred_check_branch
        %528 = sbr.rel (%p526) target = $region64
      $region63: #{sacall_forward.3} parent=23 // pred_region
        %p529 = scmp.lt.s32.totalorder %s29, 1
        %s530 = scalar_select %p529, %s29, 1
        %s531 = smul.addr %s530, 8
        %s532 = smul.addr %s531, 4
        %s533 = scalar_lea.vmem %s9, %s532
      $region64: #{sacall_forward.3} parent=23 // pred_fallthru
        _
      // Predicated region
      $region65: #{sacall_forward.3} parent=23 // pred_check
        %p534 = pneg %p313
      $region66: #{sacall_forward.3} parent=23 // pred_check_branch
        %536 = sbr.rel (%p534) target = $region68
      $region67: #{sacall_forward.3} parent=23 // pred_region
        %p537 = scmp.lt.s32.totalorder %s29, 1
        %s538 = scalar_select %p537, %s29, 1
        %s539 = scalar_lea.vmem %s10, %s538
      $region68: #{sacall_forward.3} parent=23 // pred_fallthru
        _
      // Predicated region
      $region69: #{sacall_forward.3} parent=23 // pred_check
        %p540 = pneg %p339
      $region70: #{sacall_forward.3} parent=23 // pred_check_branch
        %542 = sbr.rel (%p540) target = $region72
      $region71: #{sacall_forward.3} parent=23 // pred_region
        %p543 = scmp.lt.s32.totalorder %s29, 1
        %s544 = scalar_select %p543, %s29, 1
        %s545 = scalar_lea.vmem %s11, %s544
      $region72: #{sacall_forward.3} parent=23 // pred_fallthru
        _
      // Predicated region
      $region73: #{sacall_forward.3} parent=23 // pred_check
        %p546 = pneg %p365
      $region74: #{sacall_forward.3} parent=23 // pred_check_branch
        %548 = sbr.rel (%p546) target = $region76
      $region75: #{sacall_forward.3} parent=23 // pred_region
        %p549 = scmp.lt.s32.totalorder %s29, 1
        %s550 = scalar_select %p549, %s29, 1
        %s551 = scalar_lea.vmem %s12, %s550
      $region76: #{sacall_forward.3} parent=23 // pred_fallthru
        _
    $region24: #{sacall_forward.3} parent=5 // pred_fallthru
      _
    %p552 = scmp.le.s32.totalorder 1, %s21
    %p553 = scmp.lt.s32.totalorder %s21, 5
    %p554 = pnand %p552, %p553
    %p555 = pneg %p554
    // Predicated region
    $region77: #{sacall_forward.3} parent=5 // pred_check
      _
    $region78: #{sacall_forward.3} parent=5 // pred_check_branch
      %557 = sbr.rel (%p554) target = $region80
    $region79: #{sacall_forward.3} parent=5 // pred_region
      %s558 = ssub.s32 %s21, 1
      %p559 = scmp.lt.s32.totalorder %s30, 1
      %s560 = scalar_select %p559, %s30, 1
      %s561 = smul.addr %s560, 2
      %s562 = smul.addr %s561, 8
      %s563 = scalar_lea.vmem %s0, %s562
      %p564 = pneg %p59
      %p565 = pneg %p56
      %p566 = scmp.lt.s32.totalorder %s31, 1
      %s567 = scalar_select %p566, %s31, 1
      %s568 = smul.addr %s567, 4
      %s569 = smul.addr %s568, 4
      %s570 = scalar_lea.vmem %s1, %s569
      %p571 = pneg %p85
      %p572 = pneg %p82
      %p573 = scmp.lt.s32.totalorder %s31, 1
      %s574 = scalar_select %p573, %s31, 1
      %s575 = scalar_lea.vmem %s2, %s574
      %p576 = pneg %p111
      %p577 = pneg %p108
      %p578 = scmp.lt.s32.totalorder %s31, 1
      %s579 = scalar_select %p578, %s31, 1
      %s580 = smul.addr %s579, 4
      %s581 = smul.addr %s580, 4
      %s582 = scalar_lea.vmem %s3, %s581
      %p583 = pneg %p137
      %p584 = pneg %p134
      %p585 = scmp.lt.s32.totalorder %s31, 1
      %s586 = scalar_select %p585, %s31, 1
      %s587 = scalar_lea.vmem %s4, %s586
      %p588 = pneg %p163
      %p589 = pneg %p160
      %p590 = scmp.lt.s32.totalorder %s31, 1
      %s591 = scalar_select %p590, %s31, 1
      %s592 = scalar_lea.vmem %s5, %s591
      %p593 = pneg %p189
      %p594 = pneg %p186
      %p595 = scmp.lt.s32.totalorder %s31, 1
      %s596 = scalar_select %p595, %s31, 1
      %s597 = scalar_lea.vmem %s6, %s596
      %p598 = pneg %p215
      %p599 = pneg %p212
      %p600 = scmp.lt.s32.totalorder %s31, 1
      %s601 = scalar_select %p600, %s31, 1
      %s602 = smul.addr %s601, 4
      %s603 = smul.addr %s602, 4
      %s604 = scalar_lea.vmem %s7, %s603
      %p605 = pneg %p241
      %p606 = pneg %p238
      %p607 = scmp.lt.s32.totalorder %s31, 1
      %s608 = scalar_select %p607, %s31, 1
      %s609 = scalar_lea.vmem %s8, %s608
      %p610 = pneg %p267
      %p611 = pneg %p264
      %p612 = scmp.lt.s32.totalorder %s31, 1
      %s613 = scalar_select %p612, %s31, 1
      %s614 = smul.addr %s613, 8
      %s615 = smul.addr %s614, 4
      %s616 = scalar_lea.vmem %s9, %s615
      %p617 = pneg %p293
      %p618 = pneg %p290
      %p619 = scmp.lt.s32.totalorder %s31, 1
      %s620 = scalar_select %p619, %s31, 1
      %s621 = scalar_lea.vmem %s10, %s620
      %p622 = pneg %p319
      %p623 = pneg %p316
      %p624 = scmp.lt.s32.totalorder %s31, 1
      %s625 = scalar_select %p624, %s31, 1
      %s626 = scalar_lea.vmem %s11, %s625
      %p627 = pneg %p345
      %p628 = pneg %p342
      %p629 = scmp.lt.s32.totalorder %s31, 1
      %s630 = scalar_select %p629, %s31, 1
      %s631 = scalar_lea.vmem %s12, %s630
      %p632 = pneg %p371
      %p633 = pneg %p368
      %p634 = pneg %p392
      %p635 = pneg %p389
      %p636 = pneg %p413
      %p637 = pneg %p410
      %p638 = pneg %p439
      %p639 = pneg %p436
      %p640 = scmp.lt.s32.totalorder %s30, 1
      %s641 = scalar_select %p640, %s30, 1
      %s642 = smul.addr %s641, 2
      %s643 = smul.addr %s642, 8
      %s644 = scalar_lea.vmem %s15, %s643
      %p645 = scmp.lt.s32.totalorder %s30, 1
      %s646 = scalar_select %p645, %s30, 1
      %s647 = smul.addr %s646, 2
      %s648 = smul.addr %s647, 8
      %s649 = scalar_lea.vmem %s0, %s648
      %p650 = scmp.lt.s32.totalorder %s31, 1
      %s651 = scalar_select %p650, %s31, 1
      %s652 = smul.addr %s651, 4
      %s653 = smul.addr %s652, 4
      %s654 = scalar_lea.vmem %s1, %s653
      %p655 = scmp.lt.s32.totalorder %s31, 1
      %s656 = scalar_select %p655, %s31, 1
      %s657 = scalar_lea.vmem %s2, %s656
      %p658 = scmp.lt.s32.totalorder %s31, 1
      %s659 = scalar_select %p658, %s31, 1
      %s660 = smul.addr %s659, 4
      %s661 = smul.addr %s660, 4
      %s662 = scalar_lea.vmem %s3, %s661
      %p663 = scmp.lt.s32.totalorder %s31, 1
      %s664 = scalar_select %p663, %s31, 1
      %s665 = scalar_lea.vmem %s4, %s664
      %p666 = scmp.lt.s32.totalorder %s31, 1
      %s667 = scalar_select %p666, %s31, 1
      %s668 = scalar_lea.vmem %s5, %s667
      %p669 = scmp.lt.s32.totalorder %s31, 1
      %s670 = scalar_select %p669, %s31, 1
      %s671 = scalar_lea.vmem %s6, %s670
      %p672 = scmp.lt.s32.totalorder %s31, 1
      %s673 = scalar_select %p672, %s31, 1
      %s674 = smul.addr %s673, 4
      %s675 = smul.addr %s674, 4
      %s676 = scalar_lea.vmem %s7, %s675
      %p677 = scmp.lt.s32.totalorder %s31, 1
      %s678 = scalar_select %p677, %s31, 1
      %s679 = scalar_lea.vmem %s8, %s678
      %p680 = scmp.lt.s32.totalorder %s31, 1
      %s681 = scalar_select %p680, %s31, 1
      %s682 = smul.addr %s681, 8
      %s683 = smul.addr %s682, 4
      %s684 = scalar_lea.vmem %s9, %s683
      %p685 = scmp.lt.s32.totalorder %s31, 1
      %s686 = scalar_select %p685, %s31, 1
      %s687 = scalar_lea.vmem %s10, %s686
      %p688 = scmp.lt.s32.totalorder %s31, 1
      %s689 = scalar_select %p688, %s31, 1
      %s690 = scalar_lea.vmem %s11, %s689
      %p691 = scmp.lt.s32.totalorder %s31, 1
      %s692 = scalar_select %p691, %s31, 1
      %s693 = scalar_lea.vmem %s12, %s692
      %p694 = scmp.lt.s32.totalorder %s30, 1
      %s695 = scalar_select %p694, %s30, 1
      %s696 = smul.addr %s695, 2
      %s697 = smul.addr %s696, 8
      %s698 = scalar_lea.vmem %s15, %s697
      %p700 = scmp.eq.s32.totalorder %s31, 0
      // Predicated region
      $region81: #{sacall_forward.3} parent=79 // pred_check
        %p701 = pneg %p700
      $region82: #{sacall_forward.3} parent=79 // pred_check_branch
        %703 = sbr.rel (%p701) target = $region84
      $region83: #{sacall_forward.3} parent=79 // pred_region
        %v704 = vld [vmem:[%s649] sm:$0xff]
        %v705 = vld [vmem:[%s649 + $0x8] sm:$0xff]
        %vm706 = vcmask 261120
        %707 = vst.msk [vmem:[#allocation2] sm:$0xff] %vm706, %v704
        %708 = vst.msk [vmem:[#allocation2 + $0x8] sm:$0xff] %vm706, %v705
      $region84: #{sacall_forward.3} parent=79 // pred_fallthru
        _
      %v709 = vld [vmem:[#allocation2] sm:$0xff]
      %v710 = vld [vmem:[#allocation2 + $0x8] sm:$0xff]
      %v711 = vpack.c.bf16 %v710, %v709
      %v712 = vld [vmem:[%s654] sm:$0xf]
      %v713 = vld [vmem:[%s654 + $0x4] sm:$0xf]
      %v714 = vld [vmem:[%s654 + $0x8] sm:$0xf]
      %v715 = vld [vmem:[%s654 + $0xc] sm:$0xf]
      %v716 = vld [vmem:[%s657] sm:$0x1]
      %v718 = vlaneseq
      %v719 = vshrl.u32 %v718, 7
      %v720 = vsub.s32 0, %v719
      %v721 = vrot.slane %v716, %v720
      %v727 = vunpack.c.l.b16 %v712
      %v728 = vunpack.c.l.b16 %v713
      %v729 = vunpack.c.l.b16 %v714
      %v730 = vunpack.c.l.b16 %v715
      %v731 = vpack.c.b16 %v728, %v727
      %v732 = vpack.c.b16 %v730, %v729
      %vm735 = vcmask 261120
      %v737 = vsel %vm735, %v711, 0
      %739 = vmatprep.subr.bf16.mxu0 0
      %740 = vmatpush1.bf16.msra.mxu0 %v731
      %741 = vmatprep.subr.bf16.mxu0 0
      %742 = vmatpush1.bf16.msra.mxu0 %v732
      %743 = vmatprep.subr.bf16.mxu0 0
      %744 = vmatpush1.bf16.msra.mxu0 0
      %745 = vmatprep.subr.bf16.mxu0 0
      %746 = vmatpush1.bf16.msra.mxu0 0
      %747 = vmatprep.subr.bf16.mxu0 0
      %748 = vmatpush1.bf16.msra.mxu0 0
      %749 = vmatprep.subr.bf16.mxu0 0
      %750 = vmatpush1.bf16.msra.mxu0 0
      %751 = vmatprep.subr.bf16.mxu0 0
      %752 = vmatpush1.bf16.msra.mxu0 0
      %753 = vmatprep.subr.bf16.mxu0 0
      %754 = vmatpush1.bf16.msra.mxu0 0
      %755 = vmatprep.subr.bf16.mxu0 0
      %756 = vmatpush1.bf16.msra.mxu0 0
      %757 = vmatprep.subr.bf16.mxu0 0
      %758 = vmatpush1.bf16.msra.mxu0 0
      %759 = vmatprep.subr.bf16.mxu0 0
      %760 = vmatpush1.bf16.msra.mxu0 0
      %761 = vmatprep.subr.bf16.mxu0 0
      %762 = vmatpush1.bf16.msra.mxu0 0
      %763 = vmatprep.subr.bf16.mxu0 0
      %764 = vmatpush1.bf16.msra.mxu0 0
      %765 = vmatprep.subr.bf16.mxu0 0
      %766 = vmatpush1.bf16.msra.mxu0 0
      %767 = vmatprep.subr.bf16.mxu0 0
      %768 = vmatpush1.bf16.msra.mxu0 0
      %769 = vmatprep.subr.bf16.mxu0 0
      %770 = vmatpush1.bf16.msra.mxu0 0
      %771 = vmatprep.mubr.bf16.mxu0 0
      %772 = vmatmul.mubr.bf16.gmra.mrb[0].mxu0 %v737
      %v773 = vpop.f32.mrb[0].mxu0
      %v774 = vadd.f32 %v721, %v773
      %v775 = vpop.f32.mrb[0].mxu0
      %v776 = vpop.f32.mrb[0].mxu0
      %v777 = vadd.f32 %v721, %v776
      %v778 = vpop.f32.mrb[0].mxu0
      %779 = vdwg.mxu0
      %v780 = vpack.c.bf16 %v777, %v774
      %782 = vrot.lane.b32.xlu0 %v780, 96
      %v783 = vpop.permute.xlu0 %782
      %vm784 = vcmask 64512
      %v786 = vsel %vm784, %v780, 0
      %v789 = vsel %vm784, %v783, 0
      %791 = vmatprep.subr.bf16.mxu0 0
      %792 = vmatpush1.bf16.xpose.msra.mxu0 %v789
      %793 = vmatprep.subr.bf16.mxu0 0
      %794 = vmatpush1.bf16.xpose.msra.mxu0 0
      %795 = vmatprep.subr.bf16.mxu0 0
      %796 = vmatpush1.bf16.xpose.msra.mxu0 0
      %797 = vmatprep.subr.bf16.mxu0 0
      %798 = vmatpush1.bf16.xpose.msra.mxu0 0
      %799 = vmatprep.subr.bf16.mxu0 0
      %800 = vmatpush1.bf16.xpose.msra.mxu0 0
      %801 = vmatprep.subr.bf16.mxu0 0
      %802 = vmatpush1.bf16.xpose.msra.mxu0 0
      %803 = vmatprep.subr.bf16.mxu0 0
      %804 = vmatpush1.bf16.xpose.msra.mxu0 0
      %805 = vmatprep.subr.bf16.mxu0 0
      %806 = vmatpush1.bf16.xpose.msra.mxu0 0
      %807 = vmatprep.subr.bf16.mxu0 0
      %808 = vmatpush1.bf16.xpose.msra.mxu0 0
      %809 = vmatprep.subr.bf16.mxu0 0
      %810 = vmatpush1.bf16.xpose.msra.mxu0 0
      %811 = vmatprep.subr.bf16.mxu0 0
      %812 = vmatpush1.bf16.xpose.msra.mxu0 0
      %813 = vmatprep.subr.bf16.mxu0 0
      %814 = vmatpush1.bf16.xpose.msra.mxu0 0
      %815 = vmatprep.subr.bf16.mxu0 0
      %816 = vmatpush1.bf16.xpose.msra.mxu0 0
      %817 = vmatprep.subr.bf16.mxu0 0
      %818 = vmatpush1.bf16.xpose.msra.mxu0 0
      %819 = vmatprep.subr.bf16.mxu0 0
      %820 = vmatpush1.bf16.xpose.msra.mxu0 0
      %821 = vmatprep.subr.bf16.mxu0 0
      %822 = vmatpush1.bf16.xpose.msra.mxu0 0
      %823 = vmatprep.mubr.bf16.mxu0 0
      %824 = vmatmul.mubr.bf16.gmra.mrb[0].mxu0 %v786
      %v825 = vpop.f32.mrb[0].mxu0
      %v826 = vadd.f32 0.0, %v825
      %v827 = vpop.f32.mrb[0].mxu0
      %v828 = vpop.f32.mrb[0].mxu0
      %v829 = vadd.f32 0.0, %v828
      %v830 = vpop.f32.mrb[0].mxu0
      %831 = vdwg.mxu0
      %vm832 = vcmask 130048
      %v833 = vsel %vm832, %v826, -inf
      %834 = vmax.xlane.f32.xlu0 %v833
      %v835 = vpop.xlane.xlu0 %834
      %v836 = vsel %vm832, %v829, -inf
      %837 = vmax.xlane.f32.xlu0 %v836
      %v838 = vpop.xlane.xlu0 %837
      %v839 = vsub.f32 %v826, %v835
      %v840 = vsub.f32 %v829, %v838
      %v841 = vmul.f32 %v839, 1.442695
      %v842 = vpow.pop %v841
      %v843 = vmul.f32 %v840, 1.442695
      %v844 = vpow.pop %v843
      %v845 = vsel %vm832, %v842, 0.0
      %846 = vadd.xlane.f32.xlu0 %v845
      %v847 = vpop.xlane.xlu0 %846
      %v848 = vsel %vm832, %v844, 0.0
      %849 = vadd.xlane.f32.xlu0 %v848
      %v850 = vpop.xlane.xlu0 %849
      %v851 = vrcp.pop %v847
      %v852 = vrcp.pop %v850
      %v853 = vmul.f32 %v842, %v851
      %v854 = vmul.f32 %v844, %v852
      %v855 = vpack.c.bf16 %v854, %v853
      %856 = vrot.lane.b32.xlu0 %v780, 64
      %v857 = vpop.permute.xlu0 %856
      %v860 = vsel %vm832, %v855, 0
      %862 = vmatprep.subr.bf16.mxu0 0
      %863 = vmatpush1.bf16.msra.mxu0 %v857
      %864 = vmatprep.subr.bf16.mxu0 0
      %865 = vmatpush1.bf16.msra.mxu0 0
      %866 = vmatprep.subr.bf16.mxu0 0
      %867 = vmatpush1.bf16.msra.mxu0 0
      %868 = vmatprep.subr.bf16.mxu0 0
      %869 = vmatpush1.bf16.msra.mxu0 0
      %870 = vmatprep.subr.bf16.mxu0 0
      %871 = vmatpush1.bf16.msra.mxu0 0
      %872 = vmatprep.subr.bf16.mxu0 0
      %873 = vmatpush1.bf16.msra.mxu0 0
      %874 = vmatprep.subr.bf16.mxu0 0
      %875 = vmatpush1.bf16.msra.mxu0 0
      %876 = vmatprep.subr.bf16.mxu0 0
      %877 = vmatpush1.bf16.msra.mxu0 0
      %878 = vmatprep.subr.bf16.mxu0 0
      %879 = vmatpush1.bf16.msra.mxu0 0
      %880 = vmatprep.subr.bf16.mxu0 0
      %881 = vmatpush1.bf16.msra.mxu0 0
      %882 = vmatprep.subr.bf16.mxu0 0
      %883 = vmatpush1.bf16.msra.mxu0 0
      %884 = vmatprep.subr.bf16.mxu0 0
      %885 = vmatpush1.bf16.msra.mxu0 0
      %886 = vmatprep.subr.bf16.mxu0 0
      %887 = vmatpush1.bf16.msra.mxu0 0
      %888 = vmatprep.subr.bf16.mxu0 0
      %889 = vmatpush1.bf16.msra.mxu0 0
      %890 = vmatprep.subr.bf16.mxu0 0
      %891 = vmatpush1.bf16.msra.mxu0 0
      %892 = vmatprep.subr.bf16.mxu0 0
      %893 = vmatpush1.bf16.msra.mxu0 0
      %894 = vmatprep.mubr.bf16.mxu0 0
      %895 = vmatmul.mubr.bf16.gmra.mrb[0].mxu0 %v860
      %v896 = vpop.f32.mrb[0].mxu0
      %v897 = vadd.f32 0.0, %v896
      %v898 = vpop.f32.mrb[0].mxu0
      %v899 = vpop.f32.mrb[0].mxu0
      %v900 = vadd.f32 0.0, %v899
      %v901 = vpop.f32.mrb[0].mxu0
      %902 = vdwg.mxu0
      %903 = vrot.lane.b32.xlu0 %v780, 120
      %v904 = vpop.permute.xlu0 %903
      %905 = vrot.lane.b32.xlu0 %v780, 88
      %v906 = vpop.permute.xlu0 %905
      %v908 = vsel %vm784, %v904, 0
      %v911 = vsel %vm784, %v906, 0
      %913 = vmatprep.subr.bf16.mxu0 0
      %914 = vmatpush1.bf16.xpose.msra.mxu0 %v911
      %915 = vmatprep.subr.bf16.mxu0 0
      %916 = vmatpush1.bf16.xpose.msra.mxu0 0
      %917 = vmatprep.subr.bf16.mxu0 0
      %918 = vmatpush1.bf16.xpose.msra.mxu0 0
      %919 = vmatprep.subr.bf16.mxu0 0
      %920 = vmatpush1.bf16.xpose.msra.mxu0 0
      %921 = vmatprep.subr.bf16.mxu0 0
      %922 = vmatpush1.bf16.xpose.msra.mxu0 0
      %923 = vmatprep.subr.bf16.mxu0 0
      %924 = vmatpush1.bf16.xpose.msra.mxu0 0
      %925 = vmatprep.subr.bf16.mxu0 0
      %926 = vmatpush1.bf16.xpose.msra.mxu0 0
      %927 = vmatprep.subr.bf16.mxu0 0
      %928 = vmatpush1.bf16.xpose.msra.mxu0 0
      %929 = vmatprep.subr.bf16.mxu0 0
      %930 = vmatpush1.bf16.xpose.msra.mxu0 0
      %931 = vmatprep.subr.bf16.mxu0 0
      %932 = vmatpush1.bf16.xpose.msra.mxu0 0
      %933 = vmatprep.subr.bf16.mxu0 0
      %934 = vmatpush1.bf16.xpose.msra.mxu0 0
      %935 = vmatprep.subr.bf16.mxu0 0
      %936 = vmatpush1.bf16.xpose.msra.mxu0 0
      %937 = vmatprep.subr.bf16.mxu0 0
      %938 = vmatpush1.bf16.xpose.msra.mxu0 0
      %939 = vmatprep.subr.bf16.mxu0 0
      %940 = vmatpush1.bf16.xpose.msra.mxu0 0
      %941 = vmatprep.subr.bf16.mxu0 0
      %942 = vmatpush1.bf16.xpose.msra.mxu0 0
      %943 = vmatprep.subr.bf16.mxu0 0
      %944 = vmatpush1.bf16.xpose.msra.mxu0 0
      %945 = vmatprep.mubr.bf16.mxu0 0
      %946 = vmatmul.mubr.bf16.gmra.mrb[0].mxu0 %v908
      %v947 = vpop.f32.mrb[0].mxu0
      %v948 = vadd.f32 0.0, %v947
      %v949 = vpop.f32.mrb[0].mxu0
      %v950 = vpop.f32.mrb[0].mxu0
      %v951 = vadd.f32 0.0, %v950
      %v952 = vpop.f32.mrb[0].mxu0
      %953 = vdwg.mxu0
      %v954 = vsel %vm832, %v948, -inf
      %955 = vmax.xlane.f32.xlu0 %v954
      %v956 = vpop.xlane.xlu0 %955
      %v957 = vsel %vm832, %v951, -inf
      %958 = vmax.xlane.f32.xlu0 %v957
      %v959 = vpop.xlane.xlu0 %958
      %v960 = vsub.f32 %v948, %v956
      %v961 = vsub.f32 %v951, %v959
      %v962 = vmul.f32 %v960, 1.442695
      %v963 = vpow.pop %v962
      %v964 = vmul.f32 %v961, 1.442695
      %v965 = vpow.pop %v964
      %v966 = vsel %vm832, %v963, 0.0
      %967 = vadd.xlane.f32.xlu0 %v966
      %v968 = vpop.xlane.xlu0 %967
      %v969 = vsel %vm832, %v965, 0.0
      %970 = vadd.xlane.f32.xlu0 %v969
      %v971 = vpop.xlane.xlu0 %970
      %v972 = vrcp.pop %v968
      %v973 = vrcp.pop %v971
      %v974 = vmul.f32 %v963, %v972
      %v975 = vmul.f32 %v965, %v973
      %v976 = vpack.c.bf16 %v975, %v974
      %977 = vrot.lane.b32.xlu0 %v780, 56
      %v978 = vpop.permute.xlu0 %977
      %v981 = vsel %vm832, %v976, 0
      %983 = vmatprep.subr.bf16.mxu0 0
      %984 = vmatpush1.bf16.msra.mxu0 %v978
      %985 = vmatprep.subr.bf16.mxu0 0
      %986 = vmatpush1.bf16.msra.mxu0 0
      %987 = vmatprep.subr.bf16.mxu0 0
      %988 = vmatpush1.bf16.msra.mxu0 0
      %989 = vmatprep.subr.bf16.mxu0 0
      %990 = vmatpush1.bf16.msra.mxu0 0
      %991 = vmatprep.subr.bf16.mxu0 0
      %992 = vmatpush1.bf16.msra.mxu0 0
      %993 = vmatprep.subr.bf16.mxu0 0
      %994 = vmatpush1.bf16.msra.mxu0 0
      %995 = vmatprep.subr.bf16.mxu0 0
      %996 = vmatpush1.bf16.msra.mxu0 0
      %997 = vmatprep.subr.bf16.mxu0 0
      %998 = vmatpush1.bf16.msra.mxu0 0
      %999 = vmatprep.subr.bf16.mxu0 0
      %1000 = vmatpush1.bf16.msra.mxu0 0
      %1001 = vmatprep.subr.bf16.mxu0 0
      %1002 = vmatpush1.bf16.msra.mxu0 0
      %1003 = vmatprep.subr.bf16.mxu0 0
      %1004 = vmatpush1.bf16.msra.mxu0 0
      %1005 = vmatprep.subr.bf16.mxu0 0
      %1006 = vmatpush1.bf16.msra.mxu0 0
      %1007 = vmatprep.subr.bf16.mxu0 0
      %1008 = vmatpush1.bf16.msra.mxu0 0
      %1009 = vmatprep.subr.bf16.mxu0 0
      %1010 = vmatpush1.bf16.msra.mxu0 0
      %1011 = vmatprep.subr.bf16.mxu0 0
      %1012 = vmatpush1.bf16.msra.mxu0 0
      %1013 = vmatprep.subr.bf16.mxu0 0
      %1014 = vmatpush1.bf16.msra.mxu0 0
      %1015 = vmatprep.mubr.bf16.mxu0 0
      %1016 = vmatmul.mubr.bf16.gmra.mrb[0].mxu0 %v981
      %v1017 = vpop.f32.mrb[0].mxu0
      %v1018 = vadd.f32 0.0, %v1017
      %v1019 = vpop.f32.mrb[0].mxu0
      %v1020 = vpop.f32.mrb[0].mxu0
      %v1021 = vadd.f32 0.0, %v1020
      %v1022 = vpop.f32.mrb[0].mxu0
      %1023 = vdwg.mxu0
      %1024 = vrot.lane.b32.xlu0 %v780, 112
      %v1025 = vpop.permute.xlu0 %1024
      %1026 = vrot.lane.b32.xlu0 %v780, 80
      %v1027 = vpop.permute.xlu0 %1026
      %v1029 = vsel %vm784, %v1025, 0
      %v1032 = vsel %vm784, %v1027, 0
      %1034 = vmatprep.subr.bf16.mxu0 0
      %1035 = vmatpush1.bf16.xpose.msra.mxu0 %v1032
      %1036 = vmatprep.subr.bf16.mxu0 0
      %1037 = vmatpush1.bf16.xpose.msra.mxu0 0
      %1038 = vmatprep.subr.bf16.mxu0 0
      %1039 = vmatpush1.bf16.xpose.msra.mxu0 0
      %1040 = vmatprep.subr.bf16.mxu0 0
      %1041 = vmatpush1.bf16.xpose.msra.mxu0 0
      %1042 = vmatprep.subr.bf16.mxu0 0
      %1043 = vmatpush1.bf16.xpose.msra.mxu0 0
      %1044 = vmatprep.subr.bf16.mxu0 0
      %1045 = vmatpush1.bf16.xpose.msra.mxu0 0
      %1046 = vmatprep.subr.bf16.mxu0 0
      %1047 = vmatpush1.bf16.xpose.msra.mxu0 0
      %1048 = vmatprep.subr.bf16.mxu0 0
      %1049 = vmatpush1.bf16.xpose.msra.mxu0 0
      %1050 = vmatprep.subr.bf16.mxu0 0
      %1051 = vmatpush1.bf16.xpose.msra.mxu0 0
      %1052 = vmatprep.subr.bf16.mxu0 0
      %1053 = vmatpush1.bf16.xpose.msra.mxu0 0
      %1054 = vmatprep.subr.bf16.mxu0 0
      %1055 = vmatpush1.bf16.xpose.msra.mxu0 0
      %1056 = vmatprep.subr.bf16.mxu0 0
      %1057 = vmatpush1.bf16.xpose.msra.mxu0 0
      %1058 = vmatprep.subr.bf16.mxu0 0
      %1059 = vmatpush1.bf16.xpose.msra.mxu0 0
      %1060 = vmatprep.subr.bf16.mxu0 0
      %1061 = vmatpush1.bf16.xpose.msra.mxu0 0
      %1062 = vmatprep.subr.bf16.mxu0 0
      %1063 = vmatpush1.bf16.xpose.msra.mxu0 0
      %1064 = vmatprep.subr.bf16.mxu0 0
      %1065 = vmatpush1.bf16.xpose.msra.mxu0 0
      %1066 = vmatprep.mubr.bf16.mxu0 0
      %1067 = vmatmul.mubr.bf16.gmra.mrb[0].mxu0 %v1029
      %v1068 = vpop.f32.mrb[0].mxu0
      %v1069 = vadd.f32 0.0, %v1068
      %v1070 = vpop.f32.mrb[0].mxu0
      %v1071 = vpop.f32.mrb[0].mxu0
      %v1072 = vadd.f32 0.0, %v1071
      %v1073 = vpop.f32.mrb[0].mxu0
      %1074 = vdwg.mxu0
      %v1075 = vsel %vm832, %v1069, -inf
      %1076 = vmax.xlane.f32.xlu0 %v1075
      %v1077 = vpop.xlane.xlu0 %1076
      %v1078 = vsel %vm832, %v1072, -inf
      %1079 = vmax.xlane.f32.xlu0 %v1078
      %v1080 = vpop.xlane.xlu0 %1079
      %v1081 = vsub.f32 %v1069, %v1077
      %v1082 = vsub.f32 %v1072, %v1080
      %v1083 = vmul.f32 %v1081, 1.442695
      %v1084 = vpow.pop %v1083
      %v1085 = vmul.f32 %v1082, 1.442695
      %v1086 = vpow.pop %v1085
      %v1087 = vsel %vm832, %v1084, 0.0
      %1088 = vadd.xlane.f32.xlu0 %v1087
      %v1089 = vpop.xlane.xlu0 %1088
      %v1090 = vsel %vm832, %v1086, 0.0
      %1091 = vadd.xlane.f32.xlu0 %v1090
      %v1092 = vpop.xlane.xlu0 %1091
      %v1093 = vrcp.pop %v1089
      %v1094 = vrcp.pop %v1092
      %v1095 = vmul.f32 %v1084, %v1093
      %v1096 = vmul.f32 %v1086, %v1094
      %v1097 = vpack.c.bf16 %v1096, %v1095
      %1098 = vrot.lane.b32.xlu0 %v780, 48
      %v1099 = vpop.permute.xlu0 %1098
      %v1102 = vsel %vm832, %v1097, 0
      %1104 = vmatprep.subr.bf16.mxu0 0
      %1105 = vmatpush1.bf16.msra.mxu0 %v1099
      %1106 = vmatprep.subr.bf16.mxu0 0
      %1107 = vmatpush1.bf16.msra.mxu0 0
      %1108 = vmatprep.subr.bf16.mxu0 0
      %1109 = vmatpush1.bf16.msra.mxu0 0
      %1110 = vmatprep.subr.bf16.mxu0 0
      %1111 = vmatpush1.bf16.msra.mxu0 0
      %1112 = vmatprep.subr.bf16.mxu0 0
      %1113 = vmatpush1.bf16.msra.mxu0 0
      %1114 = vmatprep.subr.bf16.mxu0 0
      %1115 = vmatpush1.bf16.msra.mxu0 0
      %1116 = vmatprep.subr.bf16.mxu0 0
      %1117 = vmatpush1.bf16.msra.mxu0 0
      %1118 = vmatprep.subr.bf16.mxu0 0
      %1119 = vmatpush1.bf16.msra.mxu0 0
      %1120 = vmatprep.subr.bf16.mxu0 0
      %1121 = vmatpush1.bf16.msra.mxu0 0
      %1122 = vmatprep.subr.bf16.mxu0 0
      %1123 = vmatpush1.bf16.msra.mxu0 0
      %1124 = vmatprep.subr.bf16.mxu0 0
      %1125 = vmatpush1.bf16.msra.mxu0 0
      %1126 = vmatprep.subr.bf16.mxu0 0
      %1127 = vmatpush1.bf16.msra.mxu0 0
      %1128 = vmatprep.subr.bf16.mxu0 0
      %1129 = vmatpush1.bf16.msra.mxu0 0
      %1130 = vmatprep.subr.bf16.mxu0 0
      %1131 = vmatpush1.bf16.msra.mxu0 0
      %1132 = vmatprep.subr.bf16.mxu0 0
      %1133 = vmatpush1.bf16.msra.mxu0 0
      %1134 = vmatprep.subr.bf16.mxu0 0
      %1135 = vmatpush1.bf16.msra.mxu0 0
      %1136 = vmatprep.mubr.bf16.mxu0 0
      %1137 = vmatmul.mubr.bf16.gmra.mrb[0].mxu0 %v1102
      %v1138 = vpop.f32.mrb[0].mxu0
      %v1139 = vadd.f32 0.0, %v1138
      %v1140 = vpop.f32.mrb[0].mxu0
      %v1141 = vpop.f32.mrb[0].mxu0
      %v1142 = vadd.f32 0.0, %v1141
      %v1143 = vpop.f32.mrb[0].mxu0
      %1144 = vdwg.mxu0
      %1145 = vrot.lane.b32.xlu0 %v780, 104
      %v1146 = vpop.permute.xlu0 %1145
      %1147 = vrot.lane.b32.xlu0 %v780, 72
      %v1148 = vpop.permute.xlu0 %1147
      %v1150 = vsel %vm784, %v1146, 0
      %v1153 = vsel %vm784, %v1148, 0
      %1155 = vmatprep.subr.bf16.mxu0 0
      %1156 = vmatpush1.bf16.xpose.msra.mxu0 %v1153
      %1157 = vmatprep.subr.bf16.mxu0 0
      %1158 = vmatpush1.bf16.xpose.msra.mxu0 0
      %1159 = vmatprep.subr.bf16.mxu0 0
      %1160 = vmatpush1.bf16.xpose.msra.mxu0 0
      %1161 = vmatprep.subr.bf16.mxu0 0
      %1162 = vmatpush1.bf16.xpose.msra.mxu0 0
      %1163 = vmatprep.subr.bf16.mxu0 0
      %1164 = vmatpush1.bf16.xpose.msra.mxu0 0
      %1165 = vmatprep.subr.bf16.mxu0 0
      %1166 = vmatpush1.bf16.xpose.msra.mxu0 0
      %1167 = vmatprep.subr.bf16.mxu0 0
      %1168 = vmatpush1.bf16.xpose.msra.mxu0 0
      %1169 = vmatprep.subr.bf16.mxu0 0
      %1170 = vmatpush1.bf16.xpose.msra.mxu0 0
      %1171 = vmatprep.subr.bf16.mxu0 0
      %1172 = vmatpush1.bf16.xpose.msra.mxu0 0
      %1173 = vmatprep.subr.bf16.mxu0 0
      %1174 = vmatpush1.bf16.xpose.msra.mxu0 0
      %1175 = vmatprep.subr.bf16.mxu0 0
      %1176 = vmatpush1.bf16.xpose.msra.mxu0 0
      %1177 = vmatprep.subr.bf16.mxu0 0
      %1178 = vmatpush1.bf16.xpose.msra.mxu0 0
      %1179 = vmatprep.subr.bf16.mxu0 0
      %1180 = vmatpush1.bf16.xpose.msra.mxu0 0
      %1181 = vmatprep.subr.bf16.mxu0 0
      %1182 = vmatpush1.bf16.xpose.msra.mxu0 0
      %1183 = vmatprep.subr.bf16.mxu0 0
      %1184 = vmatpush1.bf16.xpose.msra.mxu0 0
      %1185 = vmatprep.subr.bf16.mxu0 0
      %1186 = vmatpush1.bf16.xpose.msra.mxu0 0
      %1187 = vmatprep.mubr.bf16.mxu0 0
      %1188 = vmatmul.mubr.bf16.gmra.mrb[0].mxu0 %v1150
      %v1189 = vpop.f32.mrb[0].mxu0
      %v1190 = vadd.f32 0.0, %v1189
      %v1191 = vpop.f32.mrb[0].mxu0
      %v1192 = vpop.f32.mrb[0].mxu0
      %v1193 = vadd.f32 0.0, %v1192
      %v1194 = vpop.f32.mrb[0].mxu0
      %1195 = vdwg.mxu0
      %v1196 = vsel %vm832, %v1190, -inf
      %1197 = vmax.xlane.f32.xlu0 %v1196
      %v1198 = vpop.xlane.xlu0 %1197
      %v1199 = vsel %vm832, %v1193, -inf
      %1200 = vmax.xlane.f32.xlu0 %v1199
      %v1201 = vpop.xlane.xlu0 %1200
      %v1202 = vsub.f32 %v1190, %v1198
      %v1203 = vsub.f32 %v1193, %v1201
      %v1204 = vmul.f32 %v1202, 1.442695
      %v1205 = vpow.pop %v1204
      %v1206 = vmul.f32 %v1203, 1.442695
      %v1207 = vpow.pop %v1206
      %v1208 = vsel %vm832, %v1205, 0.0
      %1209 = vadd.xlane.f32.xlu0 %v1208
      %v1210 = vpop.xlane.xlu0 %1209
      %v1211 = vsel %vm832, %v1207, 0.0
      %1212 = vadd.xlane.f32.xlu0 %v1211
      %v1213 = vpop.xlane.xlu0 %1212
      %v1214 = vrcp.pop %v1210
      %v1215 = vrcp.pop %v1213
      %v1216 = vmul.f32 %v1205, %v1214
      %v1217 = vmul.f32 %v1207, %v1215
      %v1218 = vpack.c.bf16 %v1217, %v1216
      %1219 = vrot.lane.b32.xlu0 %v780, 40
      %v1220 = vpop.permute.xlu0 %1219
      %v1223 = vsel %vm832, %v1218, 0
      %1225 = vmatprep.subr.bf16.mxu0 0
      %1226 = vmatpush1.bf16.msra.mxu0 %v1220
      %1227 = vmatprep.subr.bf16.mxu0 0
      %1228 = vmatpush1.bf16.msra.mxu0 0
      %1229 = vmatprep.subr.bf16.mxu0 0
      %1230 = vmatpush1.bf16.msra.mxu0 0
      %1231 = vmatprep.subr.bf16.mxu0 0
      %1232 = vmatpush1.bf16.msra.mxu0 0
      %1233 = vmatprep.subr.bf16.mxu0 0
      %1234 = vmatpush1.bf16.msra.mxu0 0
      %1235 = vmatprep.subr.bf16.mxu0 0
      %1236 = vmatpush1.bf16.msra.mxu0 0
      %1237 = vmatprep.subr.bf16.mxu0 0
      %1238 = vmatpush1.bf16.msra.mxu0 0
      %1239 = vmatprep.subr.bf16.mxu0 0
      %1240 = vmatpush1.bf16.msra.mxu0 0
      %1241 = vmatprep.subr.bf16.mxu0 0
      %1242 = vmatpush1.bf16.msra.mxu0 0
      %1243 = vmatprep.subr.bf16.mxu0 0
      %1244 = vmatpush1.bf16.msra.mxu0 0
      %1245 = vmatprep.subr.bf16.mxu0 0
      %1246 = vmatpush1.bf16.msra.mxu0 0
      %1247 = vmatprep.subr.bf16.mxu0 0
      %1248 = vmatpush1.bf16.msra.mxu0 0
      %1249 = vmatprep.subr.bf16.mxu0 0
      %1250 = vmatpush1.bf16.msra.mxu0 0
      %1251 = vmatprep.subr.bf16.mxu0 0
      %1252 = vmatpush1.bf16.msra.mxu0 0
      %1253 = vmatprep.subr.bf16.mxu0 0
      %1254 = vmatpush1.bf16.msra.mxu0 0
      %1255 = vmatprep.subr.bf16.mxu0 0
      %1256 = vmatpush1.bf16.msra.mxu0 0
      %1257 = vmatprep.mubr.bf16.mxu0 0
      %1258 = vmatmul.mubr.bf16.gmra.mrb[0].mxu0 %v1223
      %v1259 = vpop.f32.mrb[0].mxu0
      %v1260 = vadd.f32 0.0, %v1259
      %v1261 = vpop.f32.mrb[0].mxu0
      %v1262 = vpop.f32.mrb[0].mxu0
      %v1263 = vadd.f32 0.0, %v1262
      %v1264 = vpop.f32.mrb[0].mxu0
      %1265 = vdwg.mxu0
      %1268 = vrot.lane.b32.xlu0 %v1018, 8
      %v1269 = vpop.permute.xlu0 %1268
      %1270 = vrot.lane.b32.xlu0 %v1021, 8
      %v1271 = vpop.permute.xlu0 %1270
      %1276 = vrot.lane.b32.xlu0 %v1139, 16
      %v1277 = vpop.permute.xlu0 %1276
      %1278 = vrot.lane.b32.xlu0 %v1142, 16
      %v1279 = vpop.permute.xlu0 %1278
      %1284 = vrot.lane.b32.xlu0 %v1260, 24
      %v1285 = vpop.permute.xlu0 %1284
      %1286 = vrot.lane.b32.xlu0 %v1263, 24
      %v1287 = vpop.permute.xlu0 %1286
      %v1290 = vsel %vm784, %v897, %v1269
      %v1291 = vsel %vm784, %v900, %v1271
      %v1292 = vsel %vm832, %v1290, %v1277
      %v1293 = vsel %vm832, %v1291, %v1279
      %vm1294 = vcmask 195584
      %v1295 = vsel %vm1294, %v1292, %v1285
      %v1296 = vsel %vm1294, %v1293, %v1287
      %v1297 = vpack.c.bf16 %v1296, %v1295
      %v1298 = vld [vmem:[%s662] sm:$0xf]
      %v1299 = vld [vmem:[%s662 + $0x4] sm:$0xf]
      %v1300 = vld [vmem:[%s662 + $0x8] sm:$0xf]
      %v1301 = vld [vmem:[%s662 + $0xc] sm:$0xf]
      %v1302 = vld [vmem:[%s665] sm:$0x1]
      %v1304 = vlaneseq
      %v1305 = vshrl.u32 %v1304, 7
      %v1306 = vsub.s32 0, %v1305
      %v1307 = vrot.slane %v1302, %v1306
      %v1313 = vunpack.c.l.b16 %v1298
      %v1314 = vunpack.c.l.b16 %v1299
      %v1315 = vunpack.c.l.b16 %v1300
      %v1316 = vunpack.c.l.b16 %v1301
      %v1317 = vpack.c.b16 %v1314, %v1313
      %v1318 = vpack.c.b16 %v1316, %v1315
      %v1322 = vsel %vm735, %v1297, 0
      %1324 = vmatprep.subr.bf16.mxu0 0
      %1325 = vmatpush1.bf16.msra.mxu0 %v1317
      %1326 = vmatprep.subr.bf16.mxu0 0
      %1327 = vmatpush1.bf16.msra.mxu0 %v1318
      %1328 = vmatprep.subr.bf16.mxu0 0
      %1329 = vmatpush1.bf16.msra.mxu0 0
      %1330 = vmatprep.subr.bf16.mxu0 0
      %1331 = vmatpush1.bf16.msra.mxu0 0
      %1332 = vmatprep.subr.bf16.mxu0 0
      %1333 = vmatpush1.bf16.msra.mxu0 0
      %1334 = vmatprep.subr.bf16.mxu0 0
      %1335 = vmatpush1.bf16.msra.mxu0 0
      %1336 = vmatprep.subr.bf16.mxu0 0
      %1337 = vmatpush1.bf16.msra.mxu0 0
      %1338 = vmatprep.subr.bf16.mxu0 0
      %1339 = vmatpush1.bf16.msra.mxu0 0
      %1340 = vmatprep.subr.bf16.mxu0 0
      %1341 = vmatpush1.bf16.msra.mxu0 0
      %1342 = vmatprep.subr.bf16.mxu0 0
      %1343 = vmatpush1.bf16.msra.mxu0 0
      %1344 = vmatprep.subr.bf16.mxu0 0
      %1345 = vmatpush1.bf16.msra.mxu0 0
      %1346 = vmatprep.subr.bf16.mxu0 0
      %1347 = vmatpush1.bf16.msra.mxu0 0
      %1348 = vmatprep.subr.bf16.mxu0 0
      %1349 = vmatpush1.bf16.msra.mxu0 0
      %1350 = vmatprep.subr.bf16.mxu0 0
      %1351 = vmatpush1.bf16.msra.mxu0 0
      %1352 = vmatprep.subr.bf16.mxu0 0
      %1353 = vmatpush1.bf16.msra.mxu0 0
      %1354 = vmatprep.subr.bf16.mxu0 0
      %1355 = vmatpush1.bf16.msra.mxu0 0
      %1356 = vmatprep.mubr.bf16.mxu0 0
      %1357 = vmatmul.mubr.bf16.gmra.mrb[0].mxu0 %v1322
      %v1358 = vpop.f32.mrb[0].mxu0
      %v1359 = vadd.f32 %v1307, %v1358
      %v1360 = vpop.f32.mrb[0].mxu0
      %v1361 = vpop.f32.mrb[0].mxu0
      %v1362 = vadd.f32 %v1307, %v1361
      %v1363 = vpop.f32.mrb[0].mxu0
      %1364 = vdwg.mxu0
      %v1365 = vadd.f32 %v709, %v1359
      %v1366 = vadd.f32 %v710, %v1362
      %v1367 = vld [vmem:[%s668] sm:$0x1]
      %v1368 = vld [vmem:[%s671] sm:$0x1]
      %v1369 = vsel %vm735, %v1365, 0.0
      %1370 = vadd.xlane.f32.xlu0 %v1369
      %v1371 = vpop.xlane.xlu0 %1370
      %v1372 = vsel %vm735, %v1366, 0.0
      %1373 = vadd.xlane.f32.xlu0 %v1372
      %v1374 = vpop.xlane.xlu0 %1373
      %v1375 = vrcp.pop 32.0
      %v1376 = vmul.f32 %v1371, %v1375
      %v1377 = vmul.f32 %v1374, %v1375
      %v1378 = vsub.f32 %v1365, %v1376
      %v1379 = vsub.f32 %v1366, %v1377
      %v1380 = vmul.f32 %v1378, %v1378
      %v1381 = vmul.f32 %v1379, %v1379
      %v1382 = vsel %vm735, %v1380, 0.0
      %1383 = vadd.xlane.f32.xlu0 %v1382
      %v1384 = vpop.xlane.xlu0 %1383
      %v1385 = vsel %vm735, %v1381, 0.0
      %1386 = vadd.xlane.f32.xlu0 %v1385
      %v1387 = vpop.xlane.xlu0 %1386
      %v1388 = vmul.f32 %v1384, %v1375
      %v1389 = vmul.f32 %v1387, %v1375
      %v1390 = vadd.f32 %v1388, 1e-05
      %v1391 = vadd.f32 %v1389, 1e-05
      %v1392 = vrsqrt.pop %v1390
      %v1393 = vrsqrt.pop %v1391
      %v1394 = vmul.f32 %v1378, %v1392
      %v1395 = vmul.f32 %v1379, %v1393
      %v1397 = vlaneseq
      %v1398 = vshrl.u32 %v1397, 7
      %v1399 = vsub.s32 0, %v1398
      %v1400 = vrot.slane %v1367, %v1399
      %v1402 = vmul.f32 %v1394, %v1400
      %v1403 = vmul.f32 %v1395, %v1400
      %v1405 = vlaneseq
      %v1406 = vshrl.u32 %v1405, 7
      %v1407 = vsub.s32 0, %v1406
      %v1408 = vrot.slane %v1368, %v1407
      %v1410 = vadd.f32 %v1402, %v1408
      %v1411 = vadd.f32 %v1403, %v1408
      %v1412 = vpack.c.bf16 %v1411, %v1410
      %v1413 = vld [vmem:[%s676] sm:$0xf]
      %v1414 = vld [vmem:[%s676 + $0x4] sm:$0xf]
      %v1415 = vld [vmem:[%s676 + $0x8] sm:$0xf]
      %v1416 = vld [vmem:[%s676 + $0xc] sm:$0xf]
      %v1417 = vld [vmem:[%s679] sm:$0x1]
      %v1419 = vlaneseq
      %v1420 = vshrl.u32 %v1419, 7
      %v1421 = vsub.s32 0, %v1420
      %v1422 = vrot.slane %v1417, %v1421
      %v1428 = vunpack.c.l.b16 %v1413
      %v1429 = vunpack.c.l.b16 %v1414
      %v1430 = vunpack.c.l.b16 %v1415
      %v1431 = vunpack.c.l.b16 %v1416
      %v1432 = vpack.c.b16 %v1429, %v1428
      %v1433 = vpack.c.b16 %v1431, %v1430
      %v1437 = vsel %vm735, %v1412, 0
      %1439 = vmatprep.subr.bf16.mxu0 0
      %1440 = vmatpush1.bf16.msra.mxu0 %v1432
      %1441 = vmatprep.subr.bf16.mxu0 0
      %1442 = vmatpush1.bf16.msra.mxu0 %v1433
      %1443 = vmatprep.subr.bf16.mxu0 0
      %1444 = vmatpush1.bf16.msra.mxu0 0
      %1445 = vmatprep.subr.bf16.mxu0 0
      %1446 = vmatpush1.bf16.msra.mxu0 0
      %1447 = vmatprep.subr.bf16.mxu0 0
      %1448 = vmatpush1.bf16.msra.mxu0 0
      %1449 = vmatprep.subr.bf16.mxu0 0
      %1450 = vmatpush1.bf16.msra.mxu0 0
      %1451 = vmatprep.subr.bf16.mxu0 0
      %1452 = vmatpush1.bf16.msra.mxu0 0
      %1453 = vmatprep.subr.bf16.mxu0 0
      %1454 = vmatpush1.bf16.msra.mxu0 0
      %1455 = vmatprep.subr.bf16.mxu0 0
      %1456 = vmatpush1.bf16.msra.mxu0 0
      %1457 = vmatprep.subr.bf16.mxu0 0
      %1458 = vmatpush1.bf16.msra.mxu0 0
      %1459 = vmatprep.subr.bf16.mxu0 0
      %1460 = vmatpush1.bf16.msra.mxu0 0
      %1461 = vmatprep.subr.bf16.mxu0 0
      %1462 = vmatpush1.bf16.msra.mxu0 0
      %1463 = vmatprep.subr.bf16.mxu0 0
      %1464 = vmatpush1.bf16.msra.mxu0 0
      %1465 = vmatprep.subr.bf16.mxu0 0
      %1466 = vmatpush1.bf16.msra.mxu0 0
      %1467 = vmatprep.subr.bf16.mxu0 0
      %1468 = vmatpush1.bf16.msra.mxu0 0
      %1469 = vmatprep.subr.bf16.mxu0 0
      %1470 = vmatpush1.bf16.msra.mxu0 0
      %1471 = vmatprep.mubr.bf16.mxu0 0
      %1472 = vmatmul.mubr.bf16.gmra.mrb[0].mxu0 %v1437
      %v1473 = vpop.f32.mrb[0].mxu0
      %v1474 = vadd.f32 %v1422, %v1473
      %v1475 = vpop.f32.mrb[0].mxu0
      %v1476 = vpop.f32.mrb[0].mxu0
      %v1477 = vadd.f32 %v1422, %v1476
      %v1478 = vpop.f32.mrb[0].mxu0
      %1479 = vdwg.mxu0
      %v1480 = vmax.f32 %v1474, 0.0
      %v1481 = vmax.f32 %v1477, 0.0
      %v1482 = vpack.c.bf16 %v1481, %v1480
      %v1483 = vld [vmem:[%s684] sm:$0xf]
      %v1484 = vld [vmem:[%s684 + $0x4] sm:$0xf]
      %v1485 = vld [vmem:[%s684 + $0x8] sm:$0xf]
      %v1486 = vld [vmem:[%s684 + $0xc] sm:$0xf]
      %v1487 = vld [vmem:[%s684 + $0x10] sm:$0xf]
      %v1488 = vld [vmem:[%s684 + $0x14] sm:$0xf]
      %v1489 = vld [vmem:[%s684 + $0x18] sm:$0xf]
      %v1490 = vld [vmem:[%s684 + $0x1c] sm:$0xf]
      %v1491 = vld [vmem:[%s687] sm:$0x1]
      %v1493 = vlaneseq
      %v1494 = vshrl.u32 %v1493, 7
      %v1495 = vsub.s32 0, %v1494
      %v1496 = vrot.slane %v1491, %v1495
      %v1506 = vunpack.c.l.b16 %v1483
      %v1507 = vunpack.c.l.b16 %v1484
      %v1508 = vunpack.c.l.b16 %v1485
      %v1509 = vunpack.c.l.b16 %v1486
      %v1510 = vunpack.c.l.b16 %v1487
      %v1511 = vunpack.c.l.b16 %v1488
      %v1512 = vunpack.c.l.b16 %v1489
      %v1513 = vunpack.c.l.b16 %v1490
      %v1514 = vpack.c.b16 %v1507, %v1506
      %v1515 = vpack.c.b16 %v1509, %v1508
      %v1516 = vpack.c.b16 %v1511, %v1510
      %v1517 = vpack.c.b16 %v1513, %v1512
      %vm1522 = vcmask 523264
      %v1524 = vsel %vm1522, %v1482, 0
      %1526 = vmatprep.subr.bf16.mxu0 0
      %1527 = vmatpush1.bf16.msra.mxu0 %v1514
      %1528 = vmatprep.subr.bf16.mxu0 0
      %1529 = vmatpush1.bf16.msra.mxu0 %v1515
      %1530 = vmatprep.subr.bf16.mxu0 0
      %1531 = vmatpush1.bf16.msra.mxu0 %v1516
      %1532 = vmatprep.subr.bf16.mxu0 0
      %1533 = vmatpush1.bf16.msra.mxu0 %v1517
      %1534 = vmatprep.subr.bf16.mxu0 0
      %1535 = vmatpush1.bf16.msra.mxu0 0
      %1536 = vmatprep.subr.bf16.mxu0 0
      %1537 = vmatpush1.bf16.msra.mxu0 0
      %1538 = vmatprep.subr.bf16.mxu0 0
      %1539 = vmatpush1.bf16.msra.mxu0 0
      %1540 = vmatprep.subr.bf16.mxu0 0
      %1541 = vmatpush1.bf16.msra.mxu0 0
      %1542 = vmatprep.subr.bf16.mxu0 0
      %1543 = vmatpush1.bf16.msra.mxu0 0
      %1544 = vmatprep.subr.bf16.mxu0 0
      %1545 = vmatpush1.bf16.msra.mxu0 0
      %1546 = vmatprep.subr.bf16.mxu0 0
      %1547 = vmatpush1.bf16.msra.mxu0 0
      %1548 = vmatprep.subr.bf16.mxu0 0
      %1549 = vmatpush1.bf16.msra.mxu0 0
      %1550 = vmatprep.subr.bf16.mxu0 0
      %1551 = vmatpush1.bf16.msra.mxu0 0
      %1552 = vmatprep.subr.bf16.mxu0 0
      %1553 = vmatpush1.bf16.msra.mxu0 0
      %1554 = vmatprep.subr.bf16.mxu0 0
      %1555 = vmatpush1.bf16.msra.mxu0 0
      %1556 = vmatprep.subr.bf16.mxu0 0
      %1557 = vmatpush1.bf16.msra.mxu0 0
      %1558 = vmatprep.mubr.bf16.mxu0 0
      %1559 = vmatmul.mubr.bf16.gmra.mrb[0].mxu0 %v1524
      %v1560 = vpop.f32.mrb[0].mxu0
      %v1561 = vadd.f32 %v1496, %v1560
      %v1562 = vpop.f32.mrb[0].mxu0
      %v1563 = vpop.f32.mrb[0].mxu0
      %v1564 = vadd.f32 %v1496, %v1563
      %v1565 = vpop.f32.mrb[0].mxu0
      %1566 = vdwg.mxu0
      %v1567 = vadd.f32 %v1410, %v1561
      %v1568 = vadd.f32 %v1411, %v1564
      %v1569 = vld [vmem:[%s690] sm:$0x1]
      %v1570 = vld [vmem:[%s693] sm:$0x1]
      %v1571 = vsel %vm735, %v1567, 0.0
      %1572 = vadd.xlane.f32.xlu0 %v1571
      %v1573 = vpop.xlane.xlu0 %1572
      %v1574 = vsel %vm735, %v1568, 0.0
      %1575 = vadd.xlane.f32.xlu0 %v1574
      %v1576 = vpop.xlane.xlu0 %1575
      %v1577 = vmul.f32 %v1573, %v1375
      %v1578 = vmul.f32 %v1576, %v1375
      %v1579 = vsub.f32 %v1567, %v1577
      %v1580 = vsub.f32 %v1568, %v1578
      %v1581 = vmul.f32 %v1579, %v1579
      %v1582 = vmul.f32 %v1580, %v1580
      %v1583 = vsel %vm735, %v1581, 0.0
      %1584 = vadd.xlane.f32.xlu0 %v1583
      %v1585 = vpop.xlane.xlu0 %1584
      %v1586 = vsel %vm735, %v1582, 0.0
      %1587 = vadd.xlane.f32.xlu0 %v1586
      %v1588 = vpop.xlane.xlu0 %1587
      %v1589 = vmul.f32 %v1585, %v1375
      %v1590 = vmul.f32 %v1588, %v1375
      %v1591 = vadd.f32 %v1589, 1e-05
      %v1592 = vadd.f32 %v1590, 1e-05
      %v1593 = vrsqrt.pop %v1591
      %v1594 = vrsqrt.pop %v1592
      %v1595 = vmul.f32 %v1579, %v1593
      %v1596 = vmul.f32 %v1580, %v1594
      %v1598 = vlaneseq
      %v1599 = vshrl.u32 %v1598, 7
      %v1600 = vsub.s32 0, %v1599
      %v1601 = vrot.slane %v1569, %v1600
      %v1603 = vmul.f32 %v1595, %v1601
      %v1604 = vmul.f32 %v1596, %v1601
      %v1606 = vlaneseq
      %v1607 = vshrl.u32 %v1606, 7
      %v1608 = vsub.s32 0, %v1607
      %v1609 = vrot.slane %v1570, %v1608
      %v1611 = vadd.f32 %v1603, %v1609
      %v1612 = vadd.f32 %v1604, %v1609
      %1613 = vst.msk [vmem:[#allocation2] sm:$0xff] %vm735, %v1611
      %1614 = vst.msk [vmem:[#allocation2 + $0x8] sm:$0xff] %vm735, %v1612
      %p1615 = scmp.eq.s32.totalorder %s31, 1
      // Predicated region
      $region85: #{sacall_forward.3} parent=79 // pred_check
        %p1616 = pneg %p1615
      $region86: #{sacall_forward.3} parent=79 // pred_check_branch
        %1618 = sbr.rel (%p1616) target = $region88
      $region87: #{sacall_forward.3} parent=79 // pred_region
        %v1619 = vpack.c.bf16 %v1612, %v1611
        %v1620 = vld [vmem:[%s13] sm:$0xf]
        %v1621 = vld [vmem:[%s13 + $0x4] sm:$0xf]
        %v1622 = vld [vmem:[%s13 + $0x8] sm:$0xf]
        %v1623 = vld [vmem:[%s13 + $0xc] sm:$0xf]
        %v1624 = vld [vmem:[%s14] sm:$0x1]
        %v1626 = vlaneseq
        %v1627 = vshrl.u32 %v1626, 7
        %v1628 = vsub.s32 0, %v1627
        %v1629 = vrot.slane %v1624, %v1628
        %v1635 = vunpack.c.l.b16 %v1620
        %v1636 = vunpack.c.l.b16 %v1621
        %v1637 = vunpack.c.l.b16 %v1622
        %v1638 = vunpack.c.l.b16 %v1623
        %v1639 = vpack.c.b16 %v1636, %v1635
        %v1640 = vpack.c.b16 %v1638, %v1637
        %v1644 = vsel %vm735, %v1619, 0
        %1646 = vmatprep.subr.bf16.mxu0 0
        %1647 = vmatpush1.bf16.msra.mxu0 %v1639
        %1648 = vmatprep.subr.bf16.mxu0 0
        %1649 = vmatpush1.bf16.msra.mxu0 %v1640
        %1650 = vmatprep.subr.bf16.mxu0 0
        %1651 = vmatpush1.bf16.msra.mxu0 0
        %1652 = vmatprep.subr.bf16.mxu0 0
        %1653 = vmatpush1.bf16.msra.mxu0 0
        %1654 = vmatprep.subr.bf16.mxu0 0
        %1655 = vmatpush1.bf16.msra.mxu0 0
        %1656 = vmatprep.subr.bf16.mxu0 0
        %1657 = vmatpush1.bf16.msra.mxu0 0
        %1658 = vmatprep.subr.bf16.mxu0 0
        %1659 = vmatpush1.bf16.msra.mxu0 0
        %1660 = vmatprep.subr.bf16.mxu0 0
        %1661 = vmatpush1.bf16.msra.mxu0 0
        %1662 = vmatprep.subr.bf16.mxu0 0
        %1663 = vmatpush1.bf16.msra.mxu0 0
        %1664 = vmatprep.subr.bf16.mxu0 0
        %1665 = vmatpush1.bf16.msra.mxu0 0
        %1666 = vmatprep.subr.bf16.mxu0 0
        %1667 = vmatpush1.bf16.msra.mxu0 0
        %1668 = vmatprep.subr.bf16.mxu0 0
        %1669 = vmatpush1.bf16.msra.mxu0 0
        %1670 = vmatprep.subr.bf16.mxu0 0
        %1671 = vmatpush1.bf16.msra.mxu0 0
        %1672 = vmatprep.subr.bf16.mxu0 0
        %1673 = vmatpush1.bf16.msra.mxu0 0
        %1674 = vmatprep.subr.bf16.mxu0 0
        %1675 = vmatpush1.bf16.msra.mxu0 0
        %1676 = vmatprep.subr.bf16.mxu0 0
        %1677 = vmatpush1.bf16.msra.mxu0 0
        %1678 = vmatprep.mubr.bf16.mxu0 0
        %1679 = vmatmul.mubr.bf16.gmra.mrb[0].mxu0 %v1644
        %v1680 = vpop.f32.mrb[0].mxu0
        %v1681 = vadd.f32 %v1629, %v1680
        %v1682 = vpop.f32.mrb[0].mxu0
        %v1683 = vpop.f32.mrb[0].mxu0
        %v1684 = vadd.f32 %v1629, %v1683
        %v1685 = vpop.f32.mrb[0].mxu0
        %1686 = vdwg.mxu0
        %vm1687 = vcmask 39936
        %1688 = vst.msk [vmem:[%s698] sm:$0xff] %vm1687, %v1681
        %1689 = vst.msk [vmem:[%s698 + $0x8] sm:$0xff] %vm1687, %v1684
      $region88: #{sacall_forward.3} parent=79 // pred_fallthru
        _
      %p1690 = scmp.lt.s32.totalorder %s30, 1
      %s1691 = scalar_select %p1690, %s30, 1
      %s1692 = smul.addr %s1691, 2
      %s1693 = smul.addr %s1692, 8
      %s1694 = scalar_lea.vmem %s15, %s1693
      // Predicated region
      $region89: #{sacall_forward.3} parent=79 // pred_check
        %p1695 = pneg %p436
      $region90: #{sacall_forward.3} parent=79 // pred_check_branch
        %1697 = sbr.rel (%p1695) target = $region92
      $region91: #{sacall_forward.3} parent=79 // pred_region
        _
      $region92: #{sacall_forward.3} parent=79 // pred_fallthru
        _
    $region80: #{sacall_forward.3} parent=5 // pred_fallthru
      _
    %p1698 = scmp.le.s32.totalorder 2, %s21
    // Predicated region
    $region93: #{sacall_forward.3} parent=5 // pred_check
      %p1699 = pneg %p1698
    $region94: #{sacall_forward.3} parent=5 // pred_check_branch
      %1701 = sbr.rel (%p1699) target = $region96
    $region95: #{sacall_forward.3} parent=5 // pred_region
      %s1702 = ssub.s32 %s21, 2
      // Predicated region
      $region97: #{sacall_forward.3} parent=95 // pred_check
        %p1703 = pneg %p442
      $region98: #{sacall_forward.3} parent=95 // pred_check_branch
        %1705 = sbr.rel (%p1703) target = $region100
      $region99: #{sacall_forward.3} parent=95 // pred_region
        %p1706 = scmp.lt.s32.totalorder %s32, 1
        %s1707 = scalar_select %p1706, %s32, 1
        %s1708 = smul.addr %s1707, 2
        %s1709 = smul.addr %s1708, 8
        %s1710 = scalar_lea.vmem %s15, %s1709
      $region100: #{sacall_forward.3} parent=95 // pred_fallthru
        _
    $region96: #{sacall_forward.3} parent=5 // pred_fallthru
      _
  $region6: #{sacall_forward.3} parent=0 // loop_footer
    %s25 = sadd.s32 1, %s21
  $region7: #{sacall_forward.3} parent=0 // loop_footer_branch
    %20 = sbr.rel target = $region3
  $region8: #{sacall_forward.3} parent=0 // loop_exit
    _

</llo_original>
